<compile_context>
chip_gen: v6e
topology: v6e:2x2x1
jax: 0.10.0
libtpu: 0.0.40
codegen_flags: <defaults>
</compile_context>

<pallas_src>
import jax
import jax.numpy as jnp
from jax.experimental import pallas as pl
from jax.experimental.pallas import tpu as pltpu

HIDDEN = 100        # nn.Linear(2048, 100)
HIDDEN_PAD = 128    # padded to a full lane width


def _make_kernel(hw, chunk):
    """Build the fused pool + head kernel for a static HW extent."""
    n_full = hw // chunk
    rem = hw - n_full * chunk

    def kernel(x_ref, w1_ref, b1_ref, w2_ref, b2_ref, o_ref, acc_ref):
        # x_ref : (TILE_N, HW, C)    backbone features (bf16/f32), channel-last
        # w1_ref: (C, 128)    bf16   fc[0] weight, 1/HW folded in, zero-padded
        # b1_ref: (1, 128)    f32    fc[0] bias, zero-padded
        # w2_ref: (1, 128)    f32    fc[2] weight (transposed), zero-padded
        # b2_ref: (1,)        f32    fc[2] bias (SMEM scalar)
        # o_ref : (TILE_N, 1) f32
        # acc_ref: (TILE_N, C) f32   pooled-feature accumulator (VMEM scratch)
        acc_ref[...] = jnp.zeros_like(acc_ref)

        # Global average pool, accumulated over HW in sublane-sized chunks so
        # no whole-tile f32 copy of the features is ever live (the 1/HW scale
        # is folded into w1).
        def add_chunk(start, size):
            xk = x_ref[:, pl.ds(start, size), :]
            acc_ref[...] += jnp.sum(xk.astype(jnp.float32), axis=1)

        if n_full <= 4:
            # Few chunks (e.g. 7x7 ResNet features): static slice starts.
            for k in range(n_full):
                add_chunk(k * chunk, chunk)
        else:
            def body(k, carry):
                add_chunk(pl.multiple_of(k * chunk, chunk), chunk)
                return carry
            jax.lax.fori_loop(0, n_full, body, 0)
        if rem:
            add_chunk(n_full * chunk, rem)

        # fc[0]: Linear(2048, 100) (padded to 128) -- single-pass bf16 MXU
        # matmul with f32 accumulation.
        feat = acc_ref[...].astype(jnp.bfloat16)                      # (TILE_N, C)
        h = jnp.dot(feat, w1_ref[...],
                    preferred_element_type=jnp.float32) + b1_ref[...]  # (TILE_N, 128)
        # fc[1]: ReLU
        h = jnp.maximum(h, 0.0)
        # fc[2]: Linear(100, 1) as a lane reduction (padded lanes of b1/w2 are
        # exactly zero, so ReLU(0)*0 contributes nothing).
        y = jnp.sum(h * w2_ref[...], axis=-1, keepdims=True)          # (TILE_N, 1)
        o_ref[...] = y + b2_ref[0]

    return kernel


def _sublane_pack(itemsize):
    # Rows per (sublane, 128) VMEM tile for this dtype: f32 -> 8, bf16 -> 16.
    return max(8, 32 // int(itemsize))


def _vmem_capacity_bytes():
    try:
        return int(pltpu.get_tpu_info().vmem_capacity_bytes)
    except Exception:
        return 64 << 20     # conservative (v7x-sized); only shrinks budgets


def _choose_tile_n(n, per_row_bytes, x_buffer_budget_bytes,
                   min_steps=8, min_tile_bytes=1 << 20):
    """Batch tile such that two double-buffered x tiles fit the byte budget,
    the grid has >= min_steps steps (pipelining + v7x megacore sharding), and
    each tile stays >= ~1 MiB so DMA efficiency doesn't collapse."""
    budget_tile = max(1, x_buffer_budget_bytes // (2 * per_row_bytes))
    rows_min_tile = max(1, min_tile_bytes // per_row_bytes)
    steps_tile = max(rows_min_tile, -(-n // min_steps))   # cdiv(n, min_steps)
    t = min(budget_tile, steps_tile, n)
    if t < n:
        # keep the out-block second-to-last dim (8, 128)-friendly
        t = max(min(8, n), (t // 8) * 8)
    return int(max(1, t))


def wind_regressor_forward(x, w1, b1, w2, b2, *, x_buffer_budget_bytes=None):
    """Global-average-pool + regression head of WindRegressor.

    x : (N, H, W, C) or (N, HW, C) channel-last backbone features.  Feed bf16
        if possible: the kernel is HBM-bound, so f32 features double the
        streamed bytes (cast should be fused into the producing backbone op).
    w1: (2048, 100), b1: (100,), w2: (100, 1), b2: (1,) -- fc parameters.
    """
    if x.ndim == 4:
        n, h_, w_, c = x.shape
        x = x.reshape(n, h_ * w_, c)          # pure reshape, no transpose
    n, hw, c = x.shape
    assert c == w1.shape[0] and w1.shape[1] == HIDDEN

    # One-time parameter prep (outside the hot path): fold 1/HW into w1,
    # zero-pad the 100-wide hidden dim to a full 128 lanes, store w1 in bf16.
    # The padded lanes of b1/w2 must stay exactly zero (lane-reduction fc[2]).
    w1p = jnp.zeros((c, HIDDEN_PAD), jnp.bfloat16)
    w1p = w1p.at[:, :HIDDEN].set(
        (w1.astype(jnp.float32) / float(hw)).astype(jnp.bfloat16))
    b1p = jnp.zeros((1, HIDDEN_PAD), jnp.float32)
    b1p = b1p.at[:, :HIDDEN].set(b1.astype(jnp.float32))
    w2p = jnp.zeros((1, HIDDEN_PAD), jnp.float32)
    w2p = w2p.at[:, :HIDDEN].set(w2.astype(jnp.float32)[:, 0])
    b2s = b2.astype(jnp.float32).reshape(1)

    # Generation-aware budgets: v7x exposes ~64 MiB VMEM per TensorCore,
    # v5e/v6e 128 MiB physical.
    vmem_cap = _vmem_capacity_bytes()
    small_vmem = vmem_cap <= (64 << 20)
    if x_buffer_budget_bytes is None:
        x_buffer_budget_bytes = (16 << 20) if small_vmem else (32 << 20)
    vmem_limit_cap = (48 << 20) if small_vmem else (100 << 20)

    itemsize = x.dtype.itemsize
    pack = _sublane_pack(itemsize)
    hw_pad = -(-hw // pack) * pack            # sublane-padded VMEM footprint
    per_row_bytes = hw_pad * c * itemsize
    tile_n = _choose_tile_n(n, per_row_bytes, x_buffer_budget_bytes)
    grid = (pl.cdiv(n, tile_n),)

    # VMEM need: 2 double-buffered x tiles (with sublane padding) + the f32
    # pool-accumulator scratch + double-buffered params + slack.
    x_tile_bytes = tile_n * per_row_bytes
    acc_bytes = tile_n * c * 4
    param_bytes = w1p.size * 2 + (b1p.size + w2p.size) * 4
    need = 2 * x_tile_bytes + acc_bytes + 2 * param_bytes + (4 << 20)
    vmem_limit = int(min(max(need, 16 << 20), vmem_limit_cap))

    chunk = min(pack, hw)
    kernel = _make_kernel(hw, chunk)

    out = pl.pallas_call(
        kernel,
        out_shape=jax.ShapeDtypeStruct((n, 1), jnp.float32),
        grid=grid,
        in_specs=[
            pl.BlockSpec((tile_n, hw, c), lambda i: (i, 0, 0)),     # streamed
            pl.BlockSpec((c, HIDDEN_PAD), lambda i: (0, 0)),        # pinned
            pl.BlockSpec((1, HIDDEN_PAD), lambda i: (0, 0)),        # pinned
            pl.BlockSpec((1, HIDDEN_PAD), lambda i: (0, 0)),        # pinned
            pl.BlockSpec(memory_space=pltpu.MemorySpace.SMEM),      # b2 scalar
        ],
        out_specs=pl.BlockSpec((tile_n, 1), lambda i: (i, 0)),
        scratch_shapes=[pltpu.VMEM((tile_n, c), jnp.float32)],
        compiler_params=pltpu.CompilerParams(
            dimension_semantics=("parallel",),
            vmem_limit_bytes=vmem_limit),
    )(x, w1p, b1p, w2p, b2s)
    return out


def reference_forward(x, w1, b1, w2, b2):
    if x.ndim == 4:
        n, h_, w_, c = x.shape
        x = x.reshape(n, h_ * w_, c)
    feat = jnp.mean(x.astype(jnp.float32), axis=1)      # (N, 2048)
    h = jnp.maximum(feat @ w1 + b1, 0.0)                # (N, 100)
    return h @ w2 + b2                                  # (N, 1)


if __name__ == "__main__":
    key = jax.random.PRNGKey(0)
    k_x, k_w1, k_b1, k_w2, k_b2 = jax.random.split(key, 5)

    # Small shapes consistent with the module: the fc head fixes C = 2048;
    # small batch / spatial extent for the self-test.  Features are generated
    # channel-last and cast to bf16 -- the layout/dtype the backbone should
    # hand over (no NCHW->NHWC HBM transpose pass, half the HBM bytes of f32).
    N, H, W, C = 2, 4, 4, 2048
    x = jax.random.normal(k_x, (N, H, W, C),
                          dtype=jnp.float32).astype(jnp.bfloat16)

    w1 = jax.random.normal(k_w1, (2048, HIDDEN), dtype=jnp.float32) * 0.02
    b1 = jax.random.normal(k_b1, (HIDDEN,), dtype=jnp.float32) * 0.02
    w2 = jax.random.normal(k_w2, (HIDDEN, 1), dtype=jnp.float32) * 0.02
    b2 = jax.random.normal(k_b2, (1,), dtype=jnp.float32) * 0.02

    out = wind_regressor_forward(x, w1, b1, w2, b2)
    out = jax.block_until_ready(out)

    ref = reference_forward(x, w1, b1, w2, b2)
    assert out.shape == (N, 1)
    assert jnp.allclose(out, ref, atol=2e-3, rtol=2e-3), (out, ref)

    print("KERNEL_OK")
</pallas_src>

<mosaic_0001>
module attributes {stable_mosaic.version = 11 : i64} {
  func.func @kernel(%arg0: i32, %arg1: memref<2x16x2048xbf16, #tpu.memory_space<vmem>>, %arg2: memref<2048x128xbf16, #tpu.memory_space<vmem>>, %arg3: memref<1x128xf32, #tpu.memory_space<vmem>>, %arg4: memref<1x128xf32, #tpu.memory_space<vmem>>, %arg5: memref<1xf32, #tpu.memory_space<smem>>, %arg6: memref<2x1xf32, #tpu.memory_space<vmem>>, %arg7: memref<2x2048xf32, #tpu.memory_space<vmem>>) attributes {dimension_semantics = [#tpu.dimension_semantics<parallel>], iteration_bounds = array<i64: 1>, scalar_prefetch = 0 : i64, scratch_operands = 1 : i64, tpu.core_type = #tpu.core_type<tc>, window_params = [{transform_indices = @transform_0, window_bounds = array<i64: 2, 16, 2048>}, {pipeline_mode = #tpu.pipeline_mode<synchronous>, transform_indices = @transform_1, window_bounds = array<i64: 2048, 128>}, {pipeline_mode = #tpu.pipeline_mode<synchronous>, transform_indices = @transform_2, window_bounds = array<i64: 1, 128>}, {pipeline_mode = #tpu.pipeline_mode<synchronous>, transform_indices = @transform_3, window_bounds = array<i64: 1, 128>}, {transform_indices = @transform_4, window_bounds = array<i64: 1>}, {transform_indices = @transform_5, window_bounds = array<i64: 2, 1>}]} {
    %cst = arith.constant 0.000000e+00 : f32
    %0 = vector.broadcast %cst : f32 to vector<2x2048xf32>
    %c0 = arith.constant 0 : index
    %c0_0 = arith.constant 0 : index
    %1 = vector.load %arg7[%c0, %c0_0] : memref<2x2048xf32, #tpu.memory_space<vmem>>, vector<2x2048xf32>
    tpu.vector_store %arg7[%c0, %c0_0], %0 {strides = array<i32>} : memref<2x2048xf32, #tpu.memory_space<vmem>>, vector<2x2048xf32>,
    %c0_1 = arith.constant 0 : index
    %c0_2 = arith.constant 0 : index
    %c0_3 = arith.constant 0 : index
    %2 = vector.load %arg1[%c0_1, %c0_2, %c0_3] : memref<2x16x2048xbf16, #tpu.memory_space<vmem>>, vector<2x16x2048xbf16>
    %c0_4 = arith.constant 0 : index
    %c0_5 = arith.constant 0 : index
    %3 = vector.load %arg7[%c0_4, %c0_5] : memref<2x2048xf32, #tpu.memory_space<vmem>>, vector<2x2048xf32>
    %4 = arith.extf %2 : vector<2x16x2048xbf16> to vector<2x16x2048xf32>
    %cst_6 = arith.constant dense<0.000000e+00> : vector<2x2048xf32>
    %5 = vector.multi_reduction <add>, %4, %cst_6 [1] : vector<2x16x2048xf32> to vector<2x2048xf32>
    %6 = arith.addf %3, %5 : vector<2x2048xf32>
    %c0_7 = arith.constant 0 : index
    %c0_8 = arith.constant 0 : index
    %7 = vector.load %arg7[%c0_7, %c0_8] : memref<2x2048xf32, #tpu.memory_space<vmem>>, vector<2x2048xf32>
    tpu.vector_store %arg7[%c0_7, %c0_8], %6 {strides = array<i32>} : memref<2x2048xf32, #tpu.memory_space<vmem>>, vector<2x2048xf32>,
    %c0_9 = arith.constant 0 : index
    %c0_10 = arith.constant 0 : index
    %8 = vector.load %arg7[%c0_9, %c0_10] : memref<2x2048xf32, #tpu.memory_space<vmem>>, vector<2x2048xf32>
    %9 = arith.truncf %8 : vector<2x2048xf32> to vector<2x2048xbf16>
    %c0_11 = arith.constant 0 : index
    %c0_12 = arith.constant 0 : index
    %10 = vector.load %arg2[%c0_11, %c0_12] : memref<2048x128xbf16, #tpu.memory_space<vmem>>, vector<2048x128xbf16>
    %cst_13 = arith.constant dense<0.000000e+00> : vector<2x128xf32>
    %11 = tpu.matmul %9, %10, %cst_13 {dimension_numbers = #tpu.dot_dimension_numbers<[1], [0], [0], [1], [0, 0, 1, 1], [], []>} : vector<2x2048xbf16>, vector<2048x128xbf16>, vector<2x128xf32> -> vector<2x128xf32>
    %c0_14 = arith.constant 0 : index
    %c0_15 = arith.constant 0 : index
    %12 = vector.load %arg3[%c0_14, %c0_15] : memref<1x128xf32, #tpu.memory_space<vmem>>, vector<1x128xf32>
    %13 = vector.broadcast %12 : vector<1x128xf32> to vector<2x128xf32>
    %14 = arith.addf %11, %13 : vector<2x128xf32>
    %cst_16 = arith.constant 0.000000e+00 : f32
    %15 = vector.broadcast %cst_16 : f32 to vector<2x128xf32>
    %16 = arith.maximumf %14, %15 : vector<2x128xf32>
    %c0_17 = arith.constant 0 : index
    %c0_18 = arith.constant 0 : index
    %17 = vector.load %arg4[%c0_17, %c0_18] : memref<1x128xf32, #tpu.memory_space<vmem>>, vector<1x128xf32>
    %18 = vector.broadcast %17 : vector<1x128xf32> to vector<2x128xf32>
    %19 = arith.mulf %16, %18 : vector<2x128xf32>
    %cst_19 = arith.constant dense<0.000000e+00> : vector<2xf32>
    %20 = vector.multi_reduction <add>, %19, %cst_19 [1] : vector<2x128xf32> to vector<2xf32>
    %21 = vector.shape_cast %20 : vector<2xf32> to vector<2x1xf32>
    %c0_20 = arith.constant 0 : index
    %22 = memref.load %arg5[%c0_20] : memref<1xf32, #tpu.memory_space<smem>>
    %23 = vector.broadcast %22 : f32 to vector<2x1xf32>
    %24 = arith.addf %21, %23 : vector<2x1xf32>
    %c0_21 = arith.constant 0 : index
    %c0_22 = arith.constant 0 : index
    %25 = vector.load %arg6[%c0_21, %c0_22] : memref<2x1xf32, #tpu.memory_space<vmem>>, vector<2x1xf32>
    tpu.vector_store %arg6[%c0_21, %c0_22], %24 {strides = array<i32>} : memref<2x1xf32, #tpu.memory_space<vmem>>, vector<2x1xf32>,
    return
  }
  func.func @transform_0(%arg0: i32) -> (i32, i32, i32) {
    %c0_i32 = arith.constant 0 : i32
    %c0_i32_0 = arith.constant 0 : i32
    %c0_i32_1 = arith.constant 0 : i32
    return %arg0, %c0_i32, %c0_i32_0 : i32, i32, i32
  }
  func.func @transform_1(%arg0: i32) -> (i32, i32) {
    %c0_i32 = arith.constant 0 : i32
    %c0_i32_0 = arith.constant 0 : i32
    %c0_i32_1 = arith.constant 0 : i32
    return %c0_i32, %c0_i32_0 : i32, i32
  }
  func.func @transform_2(%arg0: i32) -> (i32, i32) {
    %c0_i32 = arith.constant 0 : i32
    %c0_i32_0 = arith.constant 0 : i32
    %c0_i32_1 = arith.constant 0 : i32
    return %c0_i32, %c0_i32_0 : i32, i32
  }
  func.func @transform_3(%arg0: i32) -> (i32, i32) {
    %c0_i32 = arith.constant 0 : i32
    %c0_i32_0 = arith.constant 0 : i32
    %c0_i32_1 = arith.constant 0 : i32
    return %c0_i32, %c0_i32_0 : i32, i32
  }
  func.func @transform_4(%arg0: i32) -> i32 {
    %c0_i32 = arith.constant 0 : i32
    %c0_i32_0 = arith.constant 0 : i32
    return %c0_i32 : i32
  }
  func.func @transform_5(%arg0: i32) -> (i32, i32) {
    %c0_i32 = arith.constant 0 : i32
    %c0_i32_0 = arith.constant 0 : i32
    return %arg0, %c0_i32 : i32, i32
  }
}

</mosaic_0001>

<llo_original>
// kernel: tpu_custom_call.1
$region0: #{tpu_custom_call.1}
  #allocation0 [shape = 'u32[]', space=smem, size = 0x4, offset = 0x4, fixed_abs, tag = 'smem constant byte address 0x4 - core index']
  #allocation1 [shape = 'u32[144,128]{1,0:T(1,128)}', space=vmem, size = 0x12000, scoped, tag = 'internal scratch']
  #allocation2 [shape = 'f32[2,2048]{1,0:T(2,128)}', space=vmem, size = 0x4000, scoped, tag = 'scratch operand']
  #allocation3 [shape = 'f32[1]{0:T(128)S(6)}', space=smem, size = 0x200, scoped, tag = 'scoped memory for tpu_custom_call.1']
  %s0 = inlined_call_operand.hbm [shape: bf16[2,16,2048], index: 0, kind: input, shape index: {}]
  %s1 = inlined_call_operand.hbm [shape: bf16[2048,128], index: 1, kind: input, shape index: {}]
  %s2 = inlined_call_operand.vmem [shape: f32[1,128], index: 2, kind: input, shape index: {}]
  %s3 = inlined_call_operand.vmem [shape: f32[1,128], index: 3, kind: input, shape index: {}]
  %s4 = inlined_call_operand.<no memory space> [shape: f32[1], index: 4, kind: input, shape index: {}]
  %s5 = inlined_call_operand.vmem [shape: f32[2,1], index: 5, kind: output, shape index: {}]
  %s6 = sld [smem:[#allocation0]]
  $region38: #{tpu_custom_call.1} parent=0
    _
  %s8 = ssub.s32 1, %s6
  %s9 = scalar_select 0, %s8, %s6
  %10 = sst [smem:[#allocation3]] %s4
  $region1: #{tpu_custom_call.1} parent=0
    #allocation4 [shape = 'u8[131072]{0}', space=vmem, size = 0x20000, scoped, tag = 'input window, operand 0, single buffered']
    #allocation5 [shape = 's32[1]{0}', space=sflag, size = 0x4, scoped, tag = 'scoped memory for tpu_custom_call.1']
    #allocation6 [shape = 'u8[524288]{0}', space=vmem, size = 0x80000, scoped, tag = 'input window, operand 1, single buffered']
    #allocation7 [shape = 's32[1]{0}', space=sflag, size = 0x4, scoped, tag = 'scoped memory for tpu_custom_call.1']
    %11 = vsyncpa [#allocation5], 0
    %12 = vsyncpa [#allocation7], 0
    // Predicated region
    $region2: #{tpu_custom_call.1} parent=1 // pred_check
      _
    $region3: #{tpu_custom_call.1} parent=1 // pred_check_branch
      %14 = sbr.rel (0) target = $region5
    $region4: #{tpu_custom_call.1} parent=1 // pred_region
      %s16 = ssub.s32 4096, 4096
      %17 = vsyncadd [#allocation5], %s16
      %s18 = sshll.u32 [#allocation4], 4
      %s19 = int_to_ptr.vmem [resolvable:$true] %s18
      %24 = dma.hbm_to_vmem [thread:$0]  %s0, 4096, %s19, [#allocation5], 1024, 1024, 64
    $region5: #{tpu_custom_call.1} parent=1 // pred_fallthru
      _
    // Predicated region
    $region6: #{tpu_custom_call.1} parent=1 // pred_check
      _
    $region7: #{tpu_custom_call.1} parent=1 // pred_check_branch
      %26 = sbr.rel (0) target = $region9
    $region8: #{tpu_custom_call.1} parent=1 // pred_region
      %s28 = ssub.s32 16384, 16384
      %29 = vsyncadd [#allocation7], %s28
      %s30 = sshll.u32 [#allocation6], 4
      %s31 = int_to_ptr.vmem [resolvable:$true] %s30
      %36 = dma.hbm_to_vmem [thread:$0]  %s1, 16384, %s31, [#allocation7], 64, 64, 4
    $region9: #{tpu_custom_call.1} parent=1 // pred_fallthru
      _
    // Predicated region
    $region10: #{tpu_custom_call.1} parent=1 // pred_check
      _
    $region11: #{tpu_custom_call.1} parent=1 // pred_check_branch
      %38 = sbr.rel (0) target = $region13
    $region12: #{tpu_custom_call.1} parent=1 // pred_region
      _
    $region13: #{tpu_custom_call.1} parent=1 // pred_fallthru
      _
    // Predicated region
    $region14: #{tpu_custom_call.1} parent=1 // pred_check
      _
    $region15: #{tpu_custom_call.1} parent=1 // pred_check_branch
      %40 = sbr.rel (0) target = $region17
    $region16: #{tpu_custom_call.1} parent=1 // pred_region
      _
    $region17: #{tpu_custom_call.1} parent=1 // pred_fallthru
      _
    // Predicated region
    $region18: #{tpu_custom_call.1} parent=1 // pred_check
      _
    $region19: #{tpu_custom_call.1} parent=1 // pred_check_branch
      %42 = sbr.rel (0) target = $region21
    $region20: #{tpu_custom_call.1} parent=1 // pred_region
      _
    $region21: #{tpu_custom_call.1} parent=1 // pred_fallthru
      _
    // Predicated region
    $region22: #{tpu_custom_call.1} parent=1 // pred_check
      _
    $region23: #{tpu_custom_call.1} parent=1 // pred_check_branch
      %44 = sbr.rel (0) target = $region25
    $region24: #{tpu_custom_call.1} parent=1 // pred_region
      %45 = dma.done [#allocation5], 4096
    $region25: #{tpu_custom_call.1} parent=1 // pred_fallthru
      _
    // Predicated region
    $region26: #{tpu_custom_call.1} parent=1 // pred_check
      _
    $region27: #{tpu_custom_call.1} parent=1 // pred_check_branch
      %47 = sbr.rel (0) target = $region29
    $region28: #{tpu_custom_call.1} parent=1 // pred_region
      %48 = dma.done [#allocation7], 16384
    $region29: #{tpu_custom_call.1} parent=1 // pred_fallthru
      _
    %50 = vst [vmem:[#allocation2] sm:$0xff] 0.0
    %51 = vst [vmem:[#allocation2 + $0x8] sm:$0xff] 0.0
    %52 = vst [vmem:[#allocation2 + $0x10] sm:$0xff] 0.0
    %53 = vst [vmem:[#allocation2 + $0x18] sm:$0xff] 0.0
    %v54 = vld [vmem:[#allocation4] sm:$0xff]
    %v55 = vld [vmem:[#allocation4 + $0x8] sm:$0xff]
    %v56 = vld [vmem:[#allocation4 + $0x10] sm:$0xff]
    %v57 = vld [vmem:[#allocation4 + $0x18] sm:$0xff]
    %v58 = vld [vmem:[#allocation4 + $0x20] sm:$0xff]
    %v59 = vld [vmem:[#allocation4 + $0x28] sm:$0xff]
    %v60 = vld [vmem:[#allocation4 + $0x30] sm:$0xff]
    %v61 = vld [vmem:[#allocation4 + $0x38] sm:$0xff]
    %v62 = vld [vmem:[#allocation4 + $0x40] sm:$0xff]
    %v63 = vld [vmem:[#allocation4 + $0x48] sm:$0xff]
    %v64 = vld [vmem:[#allocation4 + $0x50] sm:$0xff]
    %v65 = vld [vmem:[#allocation4 + $0x58] sm:$0xff]
    %v66 = vld [vmem:[#allocation4 + $0x60] sm:$0xff]
    %v67 = vld [vmem:[#allocation4 + $0x68] sm:$0xff]
    %v68 = vld [vmem:[#allocation4 + $0x70] sm:$0xff]
    %v69 = vld [vmem:[#allocation4 + $0x78] sm:$0xff]
    %v70 = vld [vmem:[#allocation4 + $0x80] sm:$0xff]
    %v71 = vld [vmem:[#allocation4 + $0x88] sm:$0xff]
    %v72 = vld [vmem:[#allocation4 + $0x90] sm:$0xff]
    %v73 = vld [vmem:[#allocation4 + $0x98] sm:$0xff]
    %v74 = vld [vmem:[#allocation4 + $0xa0] sm:$0xff]
    %v75 = vld [vmem:[#allocation4 + $0xa8] sm:$0xff]
    %v76 = vld [vmem:[#allocation4 + $0xb0] sm:$0xff]
    %v77 = vld [vmem:[#allocation4 + $0xb8] sm:$0xff]
    %v78 = vld [vmem:[#allocation4 + $0xc0] sm:$0xff]
    %v79 = vld [vmem:[#allocation4 + $0xc8] sm:$0xff]
    %v80 = vld [vmem:[#allocation4 + $0xd0] sm:$0xff]
    %v81 = vld [vmem:[#allocation4 + $0xd8] sm:$0xff]
    %v82 = vld [vmem:[#allocation4 + $0xe0] sm:$0xff]
    %v83 = vld [vmem:[#allocation4 + $0xe8] sm:$0xff]
    %v84 = vld [vmem:[#allocation4 + $0xf0] sm:$0xff]
    %v85 = vld [vmem:[#allocation4 + $0xf8] sm:$0xff]
    %v86 = vld [vmem:[#allocation2] sm:$0xff]
    %v87 = vld [vmem:[#allocation2 + $0x8] sm:$0xff]
    %v88 = vld [vmem:[#allocation2 + $0x10] sm:$0xff]
    %v89 = vld [vmem:[#allocation2 + $0x18] sm:$0xff]
    %v90 = vunpack.c.l.bf16 %v54
    %v91 = vunpack.c.h.bf16 %v54
    %v92 = vunpack.c.l.bf16 %v55
    %v93 = vunpack.c.h.bf16 %v55
    %v94 = vunpack.c.l.bf16 %v56
    %v95 = vunpack.c.h.bf16 %v56
    %v96 = vunpack.c.l.bf16 %v57
    %v97 = vunpack.c.h.bf16 %v57
    %v98 = vunpack.c.l.bf16 %v58
    %v99 = vunpack.c.h.bf16 %v58
    %v100 = vunpack.c.l.bf16 %v59
    %v101 = vunpack.c.h.bf16 %v59
    %v102 = vunpack.c.l.bf16 %v60
    %v103 = vunpack.c.h.bf16 %v60
    %v104 = vunpack.c.l.bf16 %v61
    %v105 = vunpack.c.h.bf16 %v61
    %v106 = vunpack.c.l.bf16 %v62
    %v107 = vunpack.c.h.bf16 %v62
    %v108 = vunpack.c.l.bf16 %v63
    %v109 = vunpack.c.h.bf16 %v63
    %v110 = vunpack.c.l.bf16 %v64
    %v111 = vunpack.c.h.bf16 %v64
    %v112 = vunpack.c.l.bf16 %v65
    %v113 = vunpack.c.h.bf16 %v65
    %v114 = vunpack.c.l.bf16 %v66
    %v115 = vunpack.c.h.bf16 %v66
    %v116 = vunpack.c.l.bf16 %v67
    %v117 = vunpack.c.h.bf16 %v67
    %v118 = vunpack.c.l.bf16 %v68
    %v119 = vunpack.c.h.bf16 %v68
    %v120 = vunpack.c.l.bf16 %v69
    %v121 = vunpack.c.h.bf16 %v69
    %v122 = vunpack.c.l.bf16 %v70
    %v123 = vunpack.c.h.bf16 %v70
    %v124 = vunpack.c.l.bf16 %v71
    %v125 = vunpack.c.h.bf16 %v71
    %v126 = vunpack.c.l.bf16 %v72
    %v127 = vunpack.c.h.bf16 %v72
    %v128 = vunpack.c.l.bf16 %v73
    %v129 = vunpack.c.h.bf16 %v73
    %v130 = vunpack.c.l.bf16 %v74
    %v131 = vunpack.c.h.bf16 %v74
    %v132 = vunpack.c.l.bf16 %v75
    %v133 = vunpack.c.h.bf16 %v75
    %v134 = vunpack.c.l.bf16 %v76
    %v135 = vunpack.c.h.bf16 %v76
    %v136 = vunpack.c.l.bf16 %v77
    %v137 = vunpack.c.h.bf16 %v77
    %v138 = vunpack.c.l.bf16 %v78
    %v139 = vunpack.c.h.bf16 %v78
    %v140 = vunpack.c.l.bf16 %v79
    %v141 = vunpack.c.h.bf16 %v79
    %v142 = vunpack.c.l.bf16 %v80
    %v143 = vunpack.c.h.bf16 %v80
    %v144 = vunpack.c.l.bf16 %v81
    %v145 = vunpack.c.h.bf16 %v81
    %v146 = vunpack.c.l.bf16 %v82
    %v147 = vunpack.c.h.bf16 %v82
    %v148 = vunpack.c.l.bf16 %v83
    %v149 = vunpack.c.h.bf16 %v83
    %v150 = vunpack.c.l.bf16 %v84
    %v151 = vunpack.c.h.bf16 %v84
    %v152 = vunpack.c.l.bf16 %v85
    %v153 = vunpack.c.h.bf16 %v85
    %v154 = vadd.f32 %v90, %v106
    %v155 = vrot.slane %v154, 4
    %v156 = vadd.f32 %v154, %v155
    %v157 = vrot.slane %v156, 2
    %v158 = vadd.f32 %v156, %v157
    %v159 = vrot.slane %v158, 1
    %v160 = vadd.f32 %v158, %v159
    %v161 = vadd.f32 %v91, %v107
    %v162 = vrot.slane %v161, 4
    %v163 = vadd.f32 %v161, %v162
    %v164 = vrot.slane %v163, 2
    %v165 = vadd.f32 %v163, %v164
    %v166 = vrot.slane %v165, 1
    %v167 = vadd.f32 %v165, %v166
    %v168 = vadd.f32 %v92, %v108
    %v169 = vrot.slane %v168, 4
    %v170 = vadd.f32 %v168, %v169
    %v171 = vrot.slane %v170, 2
    %v172 = vadd.f32 %v170, %v171
    %v173 = vrot.slane %v172, 1
    %v174 = vadd.f32 %v172, %v173
    %v175 = vadd.f32 %v93, %v109
    %v176 = vrot.slane %v175, 4
    %v177 = vadd.f32 %v175, %v176
    %v178 = vrot.slane %v177, 2
    %v179 = vadd.f32 %v177, %v178
    %v180 = vrot.slane %v179, 1
    %v181 = vadd.f32 %v179, %v180
    %v182 = vadd.f32 %v94, %v110
    %v183 = vrot.slane %v182, 4
    %v184 = vadd.f32 %v182, %v183
    %v185 = vrot.slane %v184, 2
    %v186 = vadd.f32 %v184, %v185
    %v187 = vrot.slane %v186, 1
    %v188 = vadd.f32 %v186, %v187
    %v189 = vadd.f32 %v95, %v111
    %v190 = vrot.slane %v189, 4
    %v191 = vadd.f32 %v189, %v190
    %v192 = vrot.slane %v191, 2
    %v193 = vadd.f32 %v191, %v192
    %v194 = vrot.slane %v193, 1
    %v195 = vadd.f32 %v193, %v194
    %v196 = vadd.f32 %v96, %v112
    %v197 = vrot.slane %v196, 4
    %v198 = vadd.f32 %v196, %v197
    %v199 = vrot.slane %v198, 2
    %v200 = vadd.f32 %v198, %v199
    %v201 = vrot.slane %v200, 1
    %v202 = vadd.f32 %v200, %v201
    %v203 = vadd.f32 %v97, %v113
    %v204 = vrot.slane %v203, 4
    %v205 = vadd.f32 %v203, %v204
    %v206 = vrot.slane %v205, 2
    %v207 = vadd.f32 %v205, %v206
    %v208 = vrot.slane %v207, 1
    %v209 = vadd.f32 %v207, %v208
    %v210 = vadd.f32 %v98, %v114
    %v211 = vrot.slane %v210, 4
    %v212 = vadd.f32 %v210, %v211
    %v213 = vrot.slane %v212, 2
    %v214 = vadd.f32 %v212, %v213
    %v215 = vrot.slane %v214, 1
    %v216 = vadd.f32 %v214, %v215
    %v217 = vadd.f32 %v99, %v115
    %v218 = vrot.slane %v217, 4
    %v219 = vadd.f32 %v217, %v218
    %v220 = vrot.slane %v219, 2
    %v221 = vadd.f32 %v219, %v220
    %v222 = vrot.slane %v221, 1
    %v223 = vadd.f32 %v221, %v222
    %v224 = vadd.f32 %v100, %v116
    %v225 = vrot.slane %v224, 4
    %v226 = vadd.f32 %v224, %v225
    %v227 = vrot.slane %v226, 2
    %v228 = vadd.f32 %v226, %v227
    %v229 = vrot.slane %v228, 1
    %v230 = vadd.f32 %v228, %v229
    %v231 = vadd.f32 %v101, %v117
    %v232 = vrot.slane %v231, 4
    %v233 = vadd.f32 %v231, %v232
    %v234 = vrot.slane %v233, 2
    %v235 = vadd.f32 %v233, %v234
    %v236 = vrot.slane %v235, 1
    %v237 = vadd.f32 %v235, %v236
    %v238 = vadd.f32 %v102, %v118
    %v239 = vrot.slane %v238, 4
    %v240 = vadd.f32 %v238, %v239
    %v241 = vrot.slane %v240, 2
    %v242 = vadd.f32 %v240, %v241
    %v243 = vrot.slane %v242, 1
    %v244 = vadd.f32 %v242, %v243
    %v245 = vadd.f32 %v103, %v119
    %v246 = vrot.slane %v245, 4
    %v247 = vadd.f32 %v245, %v246
    %v248 = vrot.slane %v247, 2
    %v249 = vadd.f32 %v247, %v248
    %v250 = vrot.slane %v249, 1
    %v251 = vadd.f32 %v249, %v250
    %v252 = vadd.f32 %v104, %v120
    %v253 = vrot.slane %v252, 4
    %v254 = vadd.f32 %v252, %v253
    %v255 = vrot.slane %v254, 2
    %v256 = vadd.f32 %v254, %v255
    %v257 = vrot.slane %v256, 1
    %v258 = vadd.f32 %v256, %v257
    %v259 = vadd.f32 %v105, %v121
    %v260 = vrot.slane %v259, 4
    %v261 = vadd.f32 %v259, %v260
    %v262 = vrot.slane %v261, 2
    %v263 = vadd.f32 %v261, %v262
    %v264 = vrot.slane %v263, 1
    %v265 = vadd.f32 %v263, %v264
    %v266 = vadd.f32 %v122, %v138
    %v267 = vrot.slane %v266, 4
    %v268 = vadd.f32 %v266, %v267
    %v269 = vrot.slane %v268, 2
    %v270 = vadd.f32 %v268, %v269
    %v271 = vrot.slane %v270, 1
    %v272 = vadd.f32 %v270, %v271
    %v273 = vadd.f32 %v123, %v139
    %v274 = vrot.slane %v273, 4
    %v275 = vadd.f32 %v273, %v274
    %v276 = vrot.slane %v275, 2
    %v277 = vadd.f32 %v275, %v276
    %v278 = vrot.slane %v277, 1
    %v279 = vadd.f32 %v277, %v278
    %v280 = vadd.f32 %v124, %v140
    %v281 = vrot.slane %v280, 4
    %v282 = vadd.f32 %v280, %v281
    %v283 = vrot.slane %v282, 2
    %v284 = vadd.f32 %v282, %v283
    %v285 = vrot.slane %v284, 1
    %v286 = vadd.f32 %v284, %v285
    %v287 = vadd.f32 %v125, %v141
    %v288 = vrot.slane %v287, 4
    %v289 = vadd.f32 %v287, %v288
    %v290 = vrot.slane %v289, 2
    %v291 = vadd.f32 %v289, %v290
    %v292 = vrot.slane %v291, 1
    %v293 = vadd.f32 %v291, %v292
    %v294 = vadd.f32 %v126, %v142
    %v295 = vrot.slane %v294, 4
    %v296 = vadd.f32 %v294, %v295
    %v297 = vrot.slane %v296, 2
    %v298 = vadd.f32 %v296, %v297
    %v299 = vrot.slane %v298, 1
    %v300 = vadd.f32 %v298, %v299
    %v301 = vadd.f32 %v127, %v143
    %v302 = vrot.slane %v301, 4
    %v303 = vadd.f32 %v301, %v302
    %v304 = vrot.slane %v303, 2
    %v305 = vadd.f32 %v303, %v304
    %v306 = vrot.slane %v305, 1
    %v307 = vadd.f32 %v305, %v306
    %v308 = vadd.f32 %v128, %v144
    %v309 = vrot.slane %v308, 4
    %v310 = vadd.f32 %v308, %v309
    %v311 = vrot.slane %v310, 2
    %v312 = vadd.f32 %v310, %v311
    %v313 = vrot.slane %v312, 1
    %v314 = vadd.f32 %v312, %v313
    %v315 = vadd.f32 %v129, %v145
    %v316 = vrot.slane %v315, 4
    %v317 = vadd.f32 %v315, %v316
    %v318 = vrot.slane %v317, 2
    %v319 = vadd.f32 %v317, %v318
    %v320 = vrot.slane %v319, 1
    %v321 = vadd.f32 %v319, %v320
    %v322 = vadd.f32 %v130, %v146
    %v323 = vrot.slane %v322, 4
    %v324 = vadd.f32 %v322, %v323
    %v325 = vrot.slane %v324, 2
    %v326 = vadd.f32 %v324, %v325
    %v327 = vrot.slane %v326, 1
    %v328 = vadd.f32 %v326, %v327
    %v329 = vadd.f32 %v131, %v147
    %v330 = vrot.slane %v329, 4
    %v331 = vadd.f32 %v329, %v330
    %v332 = vrot.slane %v331, 2
    %v333 = vadd.f32 %v331, %v332
    %v334 = vrot.slane %v333, 1
    %v335 = vadd.f32 %v333, %v334
    %v336 = vadd.f32 %v132, %v148
    %v337 = vrot.slane %v336, 4
    %v338 = vadd.f32 %v336, %v337
    %v339 = vrot.slane %v338, 2
    %v340 = vadd.f32 %v338, %v339
    %v341 = vrot.slane %v340, 1
    %v342 = vadd.f32 %v340, %v341
    %v343 = vadd.f32 %v133, %v149
    %v344 = vrot.slane %v343, 4
    %v345 = vadd.f32 %v343, %v344
    %v346 = vrot.slane %v345, 2
    %v347 = vadd.f32 %v345, %v346
    %v348 = vrot.slane %v347, 1
    %v349 = vadd.f32 %v347, %v348
    %v350 = vadd.f32 %v134, %v150
    %v351 = vrot.slane %v350, 4
    %v352 = vadd.f32 %v350, %v351
    %v353 = vrot.slane %v352, 2
    %v354 = vadd.f32 %v352, %v353
    %v355 = vrot.slane %v354, 1
    %v356 = vadd.f32 %v354, %v355
    %v357 = vadd.f32 %v135, %v151
    %v358 = vrot.slane %v357, 4
    %v359 = vadd.f32 %v357, %v358
    %v360 = vrot.slane %v359, 2
    %v361 = vadd.f32 %v359, %v360
    %v362 = vrot.slane %v361, 1
    %v363 = vadd.f32 %v361, %v362
    %v364 = vadd.f32 %v136, %v152
    %v365 = vrot.slane %v364, 4
    %v366 = vadd.f32 %v364, %v365
    %v367 = vrot.slane %v366, 2
    %v368 = vadd.f32 %v366, %v367
    %v369 = vrot.slane %v368, 1
    %v370 = vadd.f32 %v368, %v369
    %v371 = vadd.f32 %v137, %v153
    %v372 = vrot.slane %v371, 4
    %v373 = vadd.f32 %v371, %v372
    %v374 = vrot.slane %v373, 2
    %v375 = vadd.f32 %v373, %v374
    %v376 = vrot.slane %v375, 1
    %v377 = vadd.f32 %v375, %v376
    %v410 = vcombine.low %v160, %v167
    %v411 = vcombine.low %v174, %v181
    %v413 = vunpack.c.l.s4 1983009808
    %v414 = vunpack.c.0.s8 %v413
    %v415 = vlaneseq
    %v416 = vshrl.u32 %v415, 7
    %v417 = vsub.s32 %v414, %v416
    %v418 = vrot.slane %v410, %v417
    %v420 = vunpack.c.l.s4 1983009808
    %v421 = vunpack.c.0.s8 %v420
    %v422 = vlaneseq
    %v423 = vshrl.u32 %v422, 7
    %v424 = vsub.s32 %v421, %v423
    %v425 = vrot.slane %v411, %v424
    %v426 = vcombine.low %v418, %v425
    %v427 = vcombine.low %v188, %v195
    %v428 = vcombine.low %v202, %v209
    %v430 = vunpack.c.l.s4 1983009808
    %v431 = vunpack.c.0.s8 %v430
    %v432 = vlaneseq
    %v433 = vshrl.u32 %v432, 7
    %v434 = vsub.s32 %v431, %v433
    %v435 = vrot.slane %v427, %v434
    %v437 = vunpack.c.l.s4 1983009808
    %v438 = vunpack.c.0.s8 %v437
    %v439 = vlaneseq
    %v440 = vshrl.u32 %v439, 7
    %v441 = vsub.s32 %v438, %v440
    %v442 = vrot.slane %v428, %v441
    %v443 = vcombine.low %v435, %v442
    %v444 = vcombine.low %v216, %v223
    %v445 = vcombine.low %v230, %v237
    %v447 = vunpack.c.l.s4 1983009808
    %v448 = vunpack.c.0.s8 %v447
    %v449 = vlaneseq
    %v450 = vshrl.u32 %v449, 7
    %v451 = vsub.s32 %v448, %v450
    %v452 = vrot.slane %v444, %v451
    %v454 = vunpack.c.l.s4 1983009808
    %v455 = vunpack.c.0.s8 %v454
    %v456 = vlaneseq
    %v457 = vshrl.u32 %v456, 7
    %v458 = vsub.s32 %v455, %v457
    %v459 = vrot.slane %v445, %v458
    %v460 = vcombine.low %v452, %v459
    %v461 = vcombine.low %v244, %v251
    %v462 = vcombine.low %v258, %v265
    %v464 = vunpack.c.l.s4 1983009808
    %v465 = vunpack.c.0.s8 %v464
    %v466 = vlaneseq
    %v467 = vshrl.u32 %v466, 7
    %v468 = vsub.s32 %v465, %v467
    %v469 = vrot.slane %v461, %v468
    %v471 = vunpack.c.l.s4 1983009808
    %v472 = vunpack.c.0.s8 %v471
    %v473 = vlaneseq
    %v474 = vshrl.u32 %v473, 7
    %v475 = vsub.s32 %v472, %v474
    %v476 = vrot.slane %v462, %v475
    %v477 = vcombine.low %v469, %v476
    %v478 = vcombine.low %v272, %v279
    %v479 = vcombine.low %v286, %v293
    %v481 = vunpack.c.l.s4 1983009808
    %v482 = vunpack.c.0.s8 %v481
    %v483 = vlaneseq
    %v484 = vshrl.u32 %v483, 7
    %v485 = vsub.s32 %v482, %v484
    %v486 = vrot.slane %v478, %v485
    %v488 = vunpack.c.l.s4 1983009808
    %v489 = vunpack.c.0.s8 %v488
    %v490 = vlaneseq
    %v491 = vshrl.u32 %v490, 7
    %v492 = vsub.s32 %v489, %v491
    %v493 = vrot.slane %v479, %v492
    %v494 = vcombine.low %v486, %v493
    %v495 = vcombine.low %v300, %v307
    %v496 = vcombine.low %v314, %v321
    %v498 = vunpack.c.l.s4 1983009808
    %v499 = vunpack.c.0.s8 %v498
    %v500 = vlaneseq
    %v501 = vshrl.u32 %v500, 7
    %v502 = vsub.s32 %v499, %v501
    %v503 = vrot.slane %v495, %v502
    %v505 = vunpack.c.l.s4 1983009808
    %v506 = vunpack.c.0.s8 %v505
    %v507 = vlaneseq
    %v508 = vshrl.u32 %v507, 7
    %v509 = vsub.s32 %v506, %v508
    %v510 = vrot.slane %v496, %v509
    %v511 = vcombine.low %v503, %v510
    %v512 = vcombine.low %v328, %v335
    %v513 = vcombine.low %v342, %v349
    %v515 = vunpack.c.l.s4 1983009808
    %v516 = vunpack.c.0.s8 %v515
    %v517 = vlaneseq
    %v518 = vshrl.u32 %v517, 7
    %v519 = vsub.s32 %v516, %v518
    %v520 = vrot.slane %v512, %v519
    %v522 = vunpack.c.l.s4 1983009808
    %v523 = vunpack.c.0.s8 %v522
    %v524 = vlaneseq
    %v525 = vshrl.u32 %v524, 7
    %v526 = vsub.s32 %v523, %v525
    %v527 = vrot.slane %v513, %v526
    %v528 = vcombine.low %v520, %v527
    %v529 = vcombine.low %v356, %v363
    %v530 = vcombine.low %v370, %v377
    %v532 = vunpack.c.l.s4 1983009808
    %v533 = vunpack.c.0.s8 %v532
    %v534 = vlaneseq
    %v535 = vshrl.u32 %v534, 7
    %v536 = vsub.s32 %v533, %v535
    %v537 = vrot.slane %v529, %v536
    %v539 = vunpack.c.l.s4 1983009808
    %v540 = vunpack.c.0.s8 %v539
    %v541 = vlaneseq
    %v542 = vshrl.u32 %v541, 7
    %v543 = vsub.s32 %v540, %v542
    %v544 = vrot.slane %v530, %v543
    %v545 = vcombine.low %v537, %v544
    %vm546 = vcmask 1044484
    %v547 = vsel %vm546, %v426, %v426
    %vm548 = vcmask 1046534
    %v549 = vsel %vm548, %v426, %v547
    %v550 = vrot.slane %v494, 7
    %vm551 = vcmask 1041409
    %v552 = vsel %vm551, %v550, %v549
    %vm553 = vcmask 1043459
    %v554 = vsel %vm553, %v550, %v552
    %vm555 = vcmask 1045509
    %v556 = vsel %vm555, %v550, %v554
    %vm557 = vcmask 1047559
    %v558 = vsel %vm557, %v550, %v556
    %v559 = vsel %vm546, %v443, %v443
    %v560 = vsel %vm548, %v443, %v559
    %v561 = vrot.slane %v511, 7
    %v562 = vsel %vm551, %v561, %v560
    %v563 = vsel %vm553, %v561, %v562
    %v564 = vsel %vm555, %v561, %v563
    %v565 = vsel %vm557, %v561, %v564
    %v566 = vsel %vm546, %v460, %v460
    %v567 = vsel %vm548, %v460, %v566
    %v568 = vrot.slane %v528, 7
    %v569 = vsel %vm551, %v568, %v567
    %v570 = vsel %vm553, %v568, %v569
    %v571 = vsel %vm555, %v568, %v570
    %v572 = vsel %vm557, %v568, %v571
    %v573 = vsel %vm546, %v477, %v477
    %v574 = vsel %vm548, %v477, %v573
    %v575 = vrot.slane %v545, 7
    %v576 = vsel %vm551, %v575, %v574
    %v577 = vsel %vm553, %v575, %v576
    %v578 = vsel %vm555, %v575, %v577
    %v579 = vsel %vm557, %v575, %v578
    %v584 = vadd.f32 %v86, %v558
    %v585 = vadd.f32 %v87, %v565
    %v586 = vadd.f32 %v88, %v572
    %v587 = vadd.f32 %v89, %v579
    %588 = vst [vmem:[#allocation2] sm:$0xff] %v584
    %589 = vst [vmem:[#allocation2 + $0x8] sm:$0xff] %v585
    %590 = vst [vmem:[#allocation2 + $0x10] sm:$0xff] %v586
    %591 = vst [vmem:[#allocation2 + $0x18] sm:$0xff] %v587
    %v592 = vld [vmem:[#allocation2] sm:$0xff]
    %v593 = vld [vmem:[#allocation2 + $0x8] sm:$0xff]
    %v594 = vld [vmem:[#allocation2 + $0x10] sm:$0xff]
    %v595 = vld [vmem:[#allocation2 + $0x18] sm:$0xff]
    %v600 = vcombine.high %v592, %v592
    %v602 = vunpack.c.l.s4 1983009808
    %v603 = vunpack.c.0.s8 %v602
    %v604 = vlaneseq
    %v605 = vshrl.u32 %v604, 7
    %v606 = vsub.s32 %v603, %v605
    %v607 = vrot.slane %v592, %v606
    %v609 = vunpack.c.l.s4 1983009808
    %v610 = vunpack.c.0.s8 %v609
    %v611 = vlaneseq
    %v612 = vshrl.u32 %v611, 7
    %v613 = vsub.s32 %v610, %v612
    %v614 = vrot.slane %v600, %v613
    %v615 = vcombine.high %v607, %v607
    %v616 = vcombine.high %v614, %v614
    %v617 = vcombine.high %v593, %v593
    %v619 = vunpack.c.l.s4 1983009808
    %v620 = vunpack.c.0.s8 %v619
    %v621 = vlaneseq
    %v622 = vshrl.u32 %v621, 7
    %v623 = vsub.s32 %v620, %v622
    %v624 = vrot.slane %v593, %v623
    %v626 = vunpack.c.l.s4 1983009808
    %v627 = vunpack.c.0.s8 %v626
    %v628 = vlaneseq
    %v629 = vshrl.u32 %v628, 7
    %v630 = vsub.s32 %v627, %v629
    %v631 = vrot.slane %v617, %v630
    %v632 = vcombine.high %v624, %v624
    %v633 = vcombine.high %v631, %v631
    %v634 = vcombine.high %v594, %v594
    %v636 = vunpack.c.l.s4 1983009808
    %v637 = vunpack.c.0.s8 %v636
    %v638 = vlaneseq
    %v639 = vshrl.u32 %v638, 7
    %v640 = vsub.s32 %v637, %v639
    %v641 = vrot.slane %v594, %v640
    %v643 = vunpack.c.l.s4 1983009808
    %v644 = vunpack.c.0.s8 %v643
    %v645 = vlaneseq
    %v646 = vshrl.u32 %v645, 7
    %v647 = vsub.s32 %v644, %v646
    %v648 = vrot.slane %v634, %v647
    %v649 = vcombine.high %v641, %v641
    %v650 = vcombine.high %v648, %v648
    %v651 = vcombine.high %v595, %v595
    %v653 = vunpack.c.l.s4 1983009808
    %v654 = vunpack.c.0.s8 %v653
    %v655 = vlaneseq
    %v656 = vshrl.u32 %v655, 7
    %v657 = vsub.s32 %v654, %v656
    %v658 = vrot.slane %v595, %v657
    %v660 = vunpack.c.l.s4 1983009808
    %v661 = vunpack.c.0.s8 %v660
    %v662 = vlaneseq
    %v663 = vshrl.u32 %v662, 7
    %v664 = vsub.s32 %v661, %v663
    %v665 = vrot.slane %v651, %v664
    %v666 = vcombine.high %v658, %v658
    %v667 = vcombine.high %v665, %v665
    %v684 = vpack.c.bf16 %v607, %v607
    %v685 = vpack.c.bf16 %v615, %v615
    %v686 = vpack.c.bf16 %v614, %v614
    %v687 = vpack.c.bf16 %v616, %v616
    %v688 = vpack.c.bf16 %v624, %v624
    %v689 = vpack.c.bf16 %v632, %v632
    %v690 = vpack.c.bf16 %v631, %v631
    %v691 = vpack.c.bf16 %v633, %v633
    %v692 = vpack.c.bf16 %v641, %v641
    %v693 = vpack.c.bf16 %v649, %v649
    %v694 = vpack.c.bf16 %v648, %v648
    %v695 = vpack.c.bf16 %v650, %v650
    %v696 = vpack.c.bf16 %v658, %v658
    %v697 = vpack.c.bf16 %v666, %v666
    %v698 = vpack.c.bf16 %v665, %v665
    %v699 = vpack.c.bf16 %v667, %v667
    %v700 = vld [vmem:[#allocation6] sm:$0xf]
    %v701 = vld [vmem:[#allocation6 + $0x4] sm:$0xf]
    %v702 = vld [vmem:[#allocation6 + $0x8] sm:$0xf]
    %v703 = vld [vmem:[#allocation6 + $0xc] sm:$0xf]
    %v704 = vld [vmem:[#allocation6 + $0x10] sm:$0xf]
    %v705 = vld [vmem:[#allocation6 + $0x14] sm:$0xf]
    %v706 = vld [vmem:[#allocation6 + $0x18] sm:$0xf]
    %v707 = vld [vmem:[#allocation6 + $0x1c] sm:$0xf]
    %v708 = vld [vmem:[#allocation6 + $0x20] sm:$0xf]
    %v709 = vld [vmem:[#allocation6 + $0x24] sm:$0xf]
    %v710 = vld [vmem:[#allocation6 + $0x28] sm:$0xf]
    %v711 = vld [vmem:[#allocation6 + $0x2c] sm:$0xf]
    %v712 = vld [vmem:[#allocation6 + $0x30] sm:$0xf]
    %v713 = vld [vmem:[#allocation6 + $0x34] sm:$0xf]
    %v714 = vld [vmem:[#allocation6 + $0x38] sm:$0xf]
    %v715 = vld [vmem:[#allocation6 + $0x3c] sm:$0xf]
    %v716 = vld [vmem:[#allocation6 + $0x40] sm:$0xf]
    %v717 = vld [vmem:[#allocation6 + $0x44] sm:$0xf]
    %v718 = vld [vmem:[#allocation6 + $0x48] sm:$0xf]
    %v719 = vld [vmem:[#allocation6 + $0x4c] sm:$0xf]
    %v720 = vld [vmem:[#allocation6 + $0x50] sm:$0xf]
    %v721 = vld [vmem:[#allocation6 + $0x54] sm:$0xf]
    %v722 = vld [vmem:[#allocation6 + $0x58] sm:$0xf]
    %v723 = vld [vmem:[#allocation6 + $0x5c] sm:$0xf]
    %v724 = vld [vmem:[#allocation6 + $0x60] sm:$0xf]
    %v725 = vld [vmem:[#allocation6 + $0x64] sm:$0xf]
    %v726 = vld [vmem:[#allocation6 + $0x68] sm:$0xf]
    %v727 = vld [vmem:[#allocation6 + $0x6c] sm:$0xf]
    %v728 = vld [vmem:[#allocation6 + $0x70] sm:$0xf]
    %v729 = vld [vmem:[#allocation6 + $0x74] sm:$0xf]
    %v730 = vld [vmem:[#allocation6 + $0x78] sm:$0xf]
    %v731 = vld [vmem:[#allocation6 + $0x7c] sm:$0xf]
    %v732 = vld [vmem:[#allocation6 + $0x80] sm:$0xf]
    %v733 = vld [vmem:[#allocation6 + $0x84] sm:$0xf]
    %v734 = vld [vmem:[#allocation6 + $0x88] sm:$0xf]
    %v735 = vld [vmem:[#allocation6 + $0x8c] sm:$0xf]
    %v736 = vld [vmem:[#allocation6 + $0x90] sm:$0xf]
    %v737 = vld [vmem:[#allocation6 + $0x94] sm:$0xf]
    %v738 = vld [vmem:[#allocation6 + $0x98] sm:$0xf]
    %v739 = vld [vmem:[#allocation6 + $0x9c] sm:$0xf]
    %v740 = vld [vmem:[#allocation6 + $0xa0] sm:$0xf]
    %v741 = vld [vmem:[#allocation6 + $0xa4] sm:$0xf]
    %v742 = vld [vmem:[#allocation6 + $0xa8] sm:$0xf]
    %v743 = vld [vmem:[#allocation6 + $0xac] sm:$0xf]
    %v744 = vld [vmem:[#allocation6 + $0xb0] sm:$0xf]
    %v745 = vld [vmem:[#allocation6 + $0xb4] sm:$0xf]
    %v746 = vld [vmem:[#allocation6 + $0xb8] sm:$0xf]
    %v747 = vld [vmem:[#allocation6 + $0xbc] sm:$0xf]
    %v748 = vld [vmem:[#allocation6 + $0xc0] sm:$0xf]
    %v749 = vld [vmem:[#allocation6 + $0xc4] sm:$0xf]
    %v750 = vld [vmem:[#allocation6 + $0xc8] sm:$0xf]
    %v751 = vld [vmem:[#allocation6 + $0xcc] sm:$0xf]
    %v752 = vld [vmem:[#allocation6 + $0xd0] sm:$0xf]
    %v753 = vld [vmem:[#allocation6 + $0xd4] sm:$0xf]
    %v754 = vld [vmem:[#allocation6 + $0xd8] sm:$0xf]
    %v755 = vld [vmem:[#allocation6 + $0xdc] sm:$0xf]
    %v756 = vld [vmem:[#allocation6 + $0xe0] sm:$0xf]
    %v757 = vld [vmem:[#allocation6 + $0xe4] sm:$0xf]
    %v758 = vld [vmem:[#allocation6 + $0xe8] sm:$0xf]
    %v759 = vld [vmem:[#allocation6 + $0xec] sm:$0xf]
    %v760 = vld [vmem:[#allocation6 + $0xf0] sm:$0xf]
    %v761 = vld [vmem:[#allocation6 + $0xf4] sm:$0xf]
    %v762 = vld [vmem:[#allocation6 + $0xf8] sm:$0xf]
    %v763 = vld [vmem:[#allocation6 + $0xfc] sm:$0xf]
    %v764 = vld [vmem:[#allocation6 + $0x100] sm:$0xf]
    %v765 = vld [vmem:[#allocation6 + $0x104] sm:$0xf]
    %v766 = vld [vmem:[#allocation6 + $0x108] sm:$0xf]
    %v767 = vld [vmem:[#allocation6 + $0x10c] sm:$0xf]
    %v768 = vld [vmem:[#allocation6 + $0x110] sm:$0xf]
    %v769 = vld [vmem:[#allocation6 + $0x114] sm:$0xf]
    %v770 = vld [vmem:[#allocation6 + $0x118] sm:$0xf]
    %v771 = vld [vmem:[#allocation6 + $0x11c] sm:$0xf]
    %v772 = vld [vmem:[#allocation6 + $0x120] sm:$0xf]
    %v773 = vld [vmem:[#allocation6 + $0x124] sm:$0xf]
    %v774 = vld [vmem:[#allocation6 + $0x128] sm:$0xf]
    %v775 = vld [vmem:[#allocation6 + $0x12c] sm:$0xf]
    %v776 = vld [vmem:[#allocation6 + $0x130] sm:$0xf]
    %v777 = vld [vmem:[#allocation6 + $0x134] sm:$0xf]
    %v778 = vld [vmem:[#allocation6 + $0x138] sm:$0xf]
    %v779 = vld [vmem:[#allocation6 + $0x13c] sm:$0xf]
    %v780 = vld [vmem:[#allocation6 + $0x140] sm:$0xf]
    %v781 = vld [vmem:[#allocation6 + $0x144] sm:$0xf]
    %v782 = vld [vmem:[#allocation6 + $0x148] sm:$0xf]
    %v783 = vld [vmem:[#allocation6 + $0x14c] sm:$0xf]
    %v784 = vld [vmem:[#allocation6 + $0x150] sm:$0xf]
    %v785 = vld [vmem:[#allocation6 + $0x154] sm:$0xf]
    %v786 = vld [vmem:[#allocation6 + $0x158] sm:$0xf]
    %v787 = vld [vmem:[#allocation6 + $0x15c] sm:$0xf]
    %v788 = vld [vmem:[#allocation6 + $0x160] sm:$0xf]
    %v789 = vld [vmem:[#allocation6 + $0x164] sm:$0xf]
    %v790 = vld [vmem:[#allocation6 + $0x168] sm:$0xf]
    %v791 = vld [vmem:[#allocation6 + $0x16c] sm:$0xf]
    %v792 = vld [vmem:[#allocation6 + $0x170] sm:$0xf]
    %v793 = vld [vmem:[#allocation6 + $0x174] sm:$0xf]
    %v794 = vld [vmem:[#allocation6 + $0x178] sm:$0xf]
    %v795 = vld [vmem:[#allocation6 + $0x17c] sm:$0xf]
    %v796 = vld [vmem:[#allocation6 + $0x180] sm:$0xf]
    %v797 = vld [vmem:[#allocation6 + $0x184] sm:$0xf]
    %v798 = vld [vmem:[#allocation6 + $0x188] sm:$0xf]
    %v799 = vld [vmem:[#allocation6 + $0x18c] sm:$0xf]
    %v800 = vld [vmem:[#allocation6 + $0x190] sm:$0xf]
    %v801 = vld [vmem:[#allocation6 + $0x194] sm:$0xf]
    %v802 = vld [vmem:[#allocation6 + $0x198] sm:$0xf]
    %v803 = vld [vmem:[#allocation6 + $0x19c] sm:$0xf]
    %v804 = vld [vmem:[#allocation6 + $0x1a0] sm:$0xf]
    %v805 = vld [vmem:[#allocation6 + $0x1a4] sm:$0xf]
    %v806 = vld [vmem:[#allocation6 + $0x1a8] sm:$0xf]
    %v807 = vld [vmem:[#allocation6 + $0x1ac] sm:$0xf]
    %v808 = vld [vmem:[#allocation6 + $0x1b0] sm:$0xf]
    %v809 = vld [vmem:[#allocation6 + $0x1b4] sm:$0xf]
    %v810 = vld [vmem:[#allocation6 + $0x1b8] sm:$0xf]
    %v811 = vld [vmem:[#allocation6 + $0x1bc] sm:$0xf]
    %v812 = vld [vmem:[#allocation6 + $0x1c0] sm:$0xf]
    %v813 = vld [vmem:[#allocation6 + $0x1c4] sm:$0xf]
    %v814 = vld [vmem:[#allocation6 + $0x1c8] sm:$0xf]
    %v815 = vld [vmem:[#allocation6 + $0x1cc] sm:$0xf]
    %v816 = vld [vmem:[#allocation6 + $0x1d0] sm:$0xf]
    %v817 = vld [vmem:[#allocation6 + $0x1d4] sm:$0xf]
    %v818 = vld [vmem:[#allocation6 + $0x1d8] sm:$0xf]
    %v819 = vld [vmem:[#allocation6 + $0x1dc] sm:$0xf]
    %v820 = vld [vmem:[#allocation6 + $0x1e0] sm:$0xf]
    %v821 = vld [vmem:[#allocation6 + $0x1e4] sm:$0xf]
    %v822 = vld [vmem:[#allocation6 + $0x1e8] sm:$0xf]
    %v823 = vld [vmem:[#allocation6 + $0x1ec] sm:$0xf]
    %v824 = vld [vmem:[#allocation6 + $0x1f0] sm:$0xf]
    %v825 = vld [vmem:[#allocation6 + $0x1f4] sm:$0xf]
    %v826 = vld [vmem:[#allocation6 + $0x1f8] sm:$0xf]
    %v827 = vld [vmem:[#allocation6 + $0x1fc] sm:$0xf]
    %v828 = vld [vmem:[#allocation6 + $0x200] sm:$0xf]
    %v829 = vld [vmem:[#allocation6 + $0x204] sm:$0xf]
    %v830 = vld [vmem:[#allocation6 + $0x208] sm:$0xf]
    %v831 = vld [vmem:[#allocation6 + $0x20c] sm:$0xf]
    %v832 = vld [vmem:[#allocation6 + $0x210] sm:$0xf]
    %v833 = vld [vmem:[#allocation6 + $0x214] sm:$0xf]
    %v834 = vld [vmem:[#allocation6 + $0x218] sm:$0xf]
    %v835 = vld [vmem:[#allocation6 + $0x21c] sm:$0xf]
    %v836 = vld [vmem:[#allocation6 + $0x220] sm:$0xf]
    %v837 = vld [vmem:[#allocation6 + $0x224] sm:$0xf]
    %v838 = vld [vmem:[#allocation6 + $0x228] sm:$0xf]
    %v839 = vld [vmem:[#allocation6 + $0x22c] sm:$0xf]
    %v840 = vld [vmem:[#allocation6 + $0x230] sm:$0xf]
    %v841 = vld [vmem:[#allocation6 + $0x234] sm:$0xf]
    %v842 = vld [vmem:[#allocation6 + $0x238] sm:$0xf]
    %v843 = vld [vmem:[#allocation6 + $0x23c] sm:$0xf]
    %v844 = vld [vmem:[#allocation6 + $0x240] sm:$0xf]
    %v845 = vld [vmem:[#allocation6 + $0x244] sm:$0xf]
    %v846 = vld [vmem:[#allocation6 + $0x248] sm:$0xf]
    %v847 = vld [vmem:[#allocation6 + $0x24c] sm:$0xf]
    %v848 = vld [vmem:[#allocation6 + $0x250] sm:$0xf]
    %v849 = vld [vmem:[#allocation6 + $0x254] sm:$0xf]
    %v850 = vld [vmem:[#allocation6 + $0x258] sm:$0xf]
    %v851 = vld [vmem:[#allocation6 + $0x25c] sm:$0xf]
    %v852 = vld [vmem:[#allocation6 + $0x260] sm:$0xf]
    %v853 = vld [vmem:[#allocation6 + $0x264] sm:$0xf]
    %v854 = vld [vmem:[#allocation6 + $0x268] sm:$0xf]
    %v855 = vld [vmem:[#allocation6 + $0x26c] sm:$0xf]
    %v856 = vld [vmem:[#allocation6 + $0x270] sm:$0xf]
    %v857 = vld [vmem:[#allocation6 + $0x274] sm:$0xf]
    %v858 = vld [vmem:[#allocation6 + $0x278] sm:$0xf]
    %v859 = vld [vmem:[#allocation6 + $0x27c] sm:$0xf]
    %v860 = vld [vmem:[#allocation6 + $0x280] sm:$0xf]
    %v861 = vld [vmem:[#allocation6 + $0x284] sm:$0xf]
    %v862 = vld [vmem:[#allocation6 + $0x288] sm:$0xf]
    %v863 = vld [vmem:[#allocation6 + $0x28c] sm:$0xf]
    %v864 = vld [vmem:[#allocation6 + $0x290] sm:$0xf]
    %v865 = vld [vmem:[#allocation6 + $0x294] sm:$0xf]
    %v866 = vld [vmem:[#allocation6 + $0x298] sm:$0xf]
    %v867 = vld [vmem:[#allocation6 + $0x29c] sm:$0xf]
    %v868 = vld [vmem:[#allocation6 + $0x2a0] sm:$0xf]
    %v869 = vld [vmem:[#allocation6 + $0x2a4] sm:$0xf]
    %v870 = vld [vmem:[#allocation6 + $0x2a8] sm:$0xf]
    %v871 = vld [vmem:[#allocation6 + $0x2ac] sm:$0xf]
    %v872 = vld [vmem:[#allocation6 + $0x2b0] sm:$0xf]
    %v873 = vld [vmem:[#allocation6 + $0x2b4] sm:$0xf]
    %v874 = vld [vmem:[#allocation6 + $0x2b8] sm:$0xf]
    %v875 = vld [vmem:[#allocation6 + $0x2bc] sm:$0xf]
    %v876 = vld [vmem:[#allocation6 + $0x2c0] sm:$0xf]
    %v877 = vld [vmem:[#allocation6 + $0x2c4] sm:$0xf]
    %v878 = vld [vmem:[#allocation6 + $0x2c8] sm:$0xf]
    %v879 = vld [vmem:[#allocation6 + $0x2cc] sm:$0xf]
    %v880 = vld [vmem:[#allocation6 + $0x2d0] sm:$0xf]
    %v881 = vld [vmem:[#allocation6 + $0x2d4] sm:$0xf]
    %v882 = vld [vmem:[#allocation6 + $0x2d8] sm:$0xf]
    %v883 = vld [vmem:[#allocation6 + $0x2dc] sm:$0xf]
    %v884 = vld [vmem:[#allocation6 + $0x2e0] sm:$0xf]
    %v885 = vld [vmem:[#allocation6 + $0x2e4] sm:$0xf]
    %v886 = vld [vmem:[#allocation6 + $0x2e8] sm:$0xf]
    %v887 = vld [vmem:[#allocation6 + $0x2ec] sm:$0xf]
    %v888 = vld [vmem:[#allocation6 + $0x2f0] sm:$0xf]
    %v889 = vld [vmem:[#allocation6 + $0x2f4] sm:$0xf]
    %v890 = vld [vmem:[#allocation6 + $0x2f8] sm:$0xf]
    %v891 = vld [vmem:[#allocation6 + $0x2fc] sm:$0xf]
    %v892 = vld [vmem:[#allocation6 + $0x300] sm:$0xf]
    %v893 = vld [vmem:[#allocation6 + $0x304] sm:$0xf]
    %v894 = vld [vmem:[#allocation6 + $0x308] sm:$0xf]
    %v895 = vld [vmem:[#allocation6 + $0x30c] sm:$0xf]
    %v896 = vld [vmem:[#allocation6 + $0x310] sm:$0xf]
    %v897 = vld [vmem:[#allocation6 + $0x314] sm:$0xf]
    %v898 = vld [vmem:[#allocation6 + $0x318] sm:$0xf]
    %v899 = vld [vmem:[#allocation6 + $0x31c] sm:$0xf]
    %v900 = vld [vmem:[#allocation6 + $0x320] sm:$0xf]
    %v901 = vld [vmem:[#allocation6 + $0x324] sm:$0xf]
    %v902 = vld [vmem:[#allocation6 + $0x328] sm:$0xf]
    %v903 = vld [vmem:[#allocation6 + $0x32c] sm:$0xf]
    %v904 = vld [vmem:[#allocation6 + $0x330] sm:$0xf]
    %v905 = vld [vmem:[#allocation6 + $0x334] sm:$0xf]
    %v906 = vld [vmem:[#allocation6 + $0x338] sm:$0xf]
    %v907 = vld [vmem:[#allocation6 + $0x33c] sm:$0xf]
    %v908 = vld [vmem:[#allocation6 + $0x340] sm:$0xf]
    %v909 = vld [vmem:[#allocation6 + $0x344] sm:$0xf]
    %v910 = vld [vmem:[#allocation6 + $0x348] sm:$0xf]
    %v911 = vld [vmem:[#allocation6 + $0x34c] sm:$0xf]
    %v912 = vld [vmem:[#allocation6 + $0x350] sm:$0xf]
    %v913 = vld [vmem:[#allocation6 + $0x354] sm:$0xf]
    %v914 = vld [vmem:[#allocation6 + $0x358] sm:$0xf]
    %v915 = vld [vmem:[#allocation6 + $0x35c] sm:$0xf]
    %v916 = vld [vmem:[#allocation6 + $0x360] sm:$0xf]
    %v917 = vld [vmem:[#allocation6 + $0x364] sm:$0xf]
    %v918 = vld [vmem:[#allocation6 + $0x368] sm:$0xf]
    %v919 = vld [vmem:[#allocation6 + $0x36c] sm:$0xf]
    %v920 = vld [vmem:[#allocation6 + $0x370] sm:$0xf]
    %v921 = vld [vmem:[#allocation6 + $0x374] sm:$0xf]
    %v922 = vld [vmem:[#allocation6 + $0x378] sm:$0xf]
    %v923 = vld [vmem:[#allocation6 + $0x37c] sm:$0xf]
    %v924 = vld [vmem:[#allocation6 + $0x380] sm:$0xf]
    %v925 = vld [vmem:[#allocation6 + $0x384] sm:$0xf]
    %v926 = vld [vmem:[#allocation6 + $0x388] sm:$0xf]
    %v927 = vld [vmem:[#allocation6 + $0x38c] sm:$0xf]
    %v928 = vld [vmem:[#allocation6 + $0x390] sm:$0xf]
    %v929 = vld [vmem:[#allocation6 + $0x394] sm:$0xf]
    %v930 = vld [vmem:[#allocation6 + $0x398] sm:$0xf]
    %v931 = vld [vmem:[#allocation6 + $0x39c] sm:$0xf]
    %v932 = vld [vmem:[#allocation6 + $0x3a0] sm:$0xf]
    %v933 = vld [vmem:[#allocation6 + $0x3a4] sm:$0xf]
    %v934 = vld [vmem:[#allocation6 + $0x3a8] sm:$0xf]
    %v935 = vld [vmem:[#allocation6 + $0x3ac] sm:$0xf]
    %v936 = vld [vmem:[#allocation6 + $0x3b0] sm:$0xf]
    %v937 = vld [vmem:[#allocation6 + $0x3b4] sm:$0xf]
    %v938 = vld [vmem:[#allocation6 + $0x3b8] sm:$0xf]
    %v939 = vld [vmem:[#allocation6 + $0x3bc] sm:$0xf]
    %v940 = vld [vmem:[#allocation6 + $0x3c0] sm:$0xf]
    %v941 = vld [vmem:[#allocation6 + $0x3c4] sm:$0xf]
    %v942 = vld [vmem:[#allocation6 + $0x3c8] sm:$0xf]
    %v943 = vld [vmem:[#allocation6 + $0x3cc] sm:$0xf]
    %v944 = vld [vmem:[#allocation6 + $0x3d0] sm:$0xf]
    %v945 = vld [vmem:[#allocation6 + $0x3d4] sm:$0xf]
    %v946 = vld [vmem:[#allocation6 + $0x3d8] sm:$0xf]
    %v947 = vld [vmem:[#allocation6 + $0x3dc] sm:$0xf]
    %v948 = vld [vmem:[#allocation6 + $0x3e0] sm:$0xf]
    %v949 = vld [vmem:[#allocation6 + $0x3e4] sm:$0xf]
    %v950 = vld [vmem:[#allocation6 + $0x3e8] sm:$0xf]
    %v951 = vld [vmem:[#allocation6 + $0x3ec] sm:$0xf]
    %v952 = vld [vmem:[#allocation6 + $0x3f0] sm:$0xf]
    %v953 = vld [vmem:[#allocation6 + $0x3f4] sm:$0xf]
    %v954 = vld [vmem:[#allocation6 + $0x3f8] sm:$0xf]
    %v955 = vld [vmem:[#allocation6 + $0x3fc] sm:$0xf]
    %v956 = vld [vmem:[%s2] sm:$0x1]
    %v958 = vlaneseq
    %v959 = vshrl.u32 %v958, 7
    %v960 = vsub.s32 0, %v959
    %v961 = vrot.slane %v956, %v960
    %v1219 = vunpack.c.l.b16 %v700
    %v1220 = vunpack.c.l.b16 %v701
    %v1221 = vunpack.c.l.b16 %v702
    %v1222 = vunpack.c.l.b16 %v703
    %v1223 = vunpack.c.l.b16 %v704
    %v1224 = vunpack.c.l.b16 %v705
    %v1225 = vunpack.c.l.b16 %v706
    %v1226 = vunpack.c.l.b16 %v707
    %v1227 = vunpack.c.l.b16 %v708
    %v1228 = vunpack.c.l.b16 %v709
    %v1229 = vunpack.c.l.b16 %v710
    %v1230 = vunpack.c.l.b16 %v711
    %v1231 = vunpack.c.l.b16 %v712
    %v1232 = vunpack.c.l.b16 %v713
    %v1233 = vunpack.c.l.b16 %v714
    %v1234 = vunpack.c.l.b16 %v715
    %v1235 = vunpack.c.l.b16 %v716
    %v1236 = vunpack.c.l.b16 %v717
    %v1237 = vunpack.c.l.b16 %v718
    %v1238 = vunpack.c.l.b16 %v719
    %v1239 = vunpack.c.l.b16 %v720
    %v1240 = vunpack.c.l.b16 %v721
    %v1241 = vunpack.c.l.b16 %v722
    %v1242 = vunpack.c.l.b16 %v723
    %v1243 = vunpack.c.l.b16 %v724
    %v1244 = vunpack.c.l.b16 %v725
    %v1245 = vunpack.c.l.b16 %v726
    %v1246 = vunpack.c.l.b16 %v727
    %v1247 = vunpack.c.l.b16 %v728
    %v1248 = vunpack.c.l.b16 %v729
    %v1249 = vunpack.c.l.b16 %v730
    %v1250 = vunpack.c.l.b16 %v731
    %v1251 = vunpack.c.l.b16 %v732
    %v1252 = vunpack.c.l.b16 %v733
    %v1253 = vunpack.c.l.b16 %v734
    %v1254 = vunpack.c.l.b16 %v735
    %v1255 = vunpack.c.l.b16 %v736
    %v1256 = vunpack.c.l.b16 %v737
    %v1257 = vunpack.c.l.b16 %v738
    %v1258 = vunpack.c.l.b16 %v739
    %v1259 = vunpack.c.l.b16 %v740
    %v1260 = vunpack.c.l.b16 %v741
    %v1261 = vunpack.c.l.b16 %v742
    %v1262 = vunpack.c.l.b16 %v743
    %v1263 = vunpack.c.l.b16 %v744
    %v1264 = vunpack.c.l.b16 %v745
    %v1265 = vunpack.c.l.b16 %v746
    %v1266 = vunpack.c.l.b16 %v747
    %v1267 = vunpack.c.l.b16 %v748
    %v1268 = vunpack.c.l.b16 %v749
    %v1269 = vunpack.c.l.b16 %v750
    %v1270 = vunpack.c.l.b16 %v751
    %v1271 = vunpack.c.l.b16 %v752
    %v1272 = vunpack.c.l.b16 %v753
    %v1273 = vunpack.c.l.b16 %v754
    %v1274 = vunpack.c.l.b16 %v755
    %v1275 = vunpack.c.l.b16 %v756
    %v1276 = vunpack.c.l.b16 %v757
    %v1277 = vunpack.c.l.b16 %v758
    %v1278 = vunpack.c.l.b16 %v759
    %v1279 = vunpack.c.l.b16 %v760
    %v1280 = vunpack.c.l.b16 %v761
    %v1281 = vunpack.c.l.b16 %v762
    %v1282 = vunpack.c.l.b16 %v763
    %v1283 = vunpack.c.l.b16 %v764
    %v1284 = vunpack.c.l.b16 %v765
    %v1285 = vunpack.c.l.b16 %v766
    %v1286 = vunpack.c.l.b16 %v767
    %v1287 = vunpack.c.l.b16 %v768
    %v1288 = vunpack.c.l.b16 %v769
    %v1289 = vunpack.c.l.b16 %v770
    %v1290 = vunpack.c.l.b16 %v771
    %v1291 = vunpack.c.l.b16 %v772
    %v1292 = vunpack.c.l.b16 %v773
    %v1293 = vunpack.c.l.b16 %v774
    %v1294 = vunpack.c.l.b16 %v775
    %v1295 = vunpack.c.l.b16 %v776
    %v1296 = vunpack.c.l.b16 %v777
    %v1297 = vunpack.c.l.b16 %v778
    %v1298 = vunpack.c.l.b16 %v779
    %v1299 = vunpack.c.l.b16 %v780
    %v1300 = vunpack.c.l.b16 %v781
    %v1301 = vunpack.c.l.b16 %v782
    %v1302 = vunpack.c.l.b16 %v783
    %v1303 = vunpack.c.l.b16 %v784
    %v1304 = vunpack.c.l.b16 %v785
    %v1305 = vunpack.c.l.b16 %v786
    %v1306 = vunpack.c.l.b16 %v787
    %v1307 = vunpack.c.l.b16 %v788
    %v1308 = vunpack.c.l.b16 %v789
    %v1309 = vunpack.c.l.b16 %v790
    %v1310 = vunpack.c.l.b16 %v791
    %v1311 = vunpack.c.l.b16 %v792
    %v1312 = vunpack.c.l.b16 %v793
    %v1313 = vunpack.c.l.b16 %v794
    %v1314 = vunpack.c.l.b16 %v795
    %v1315 = vunpack.c.l.b16 %v796
    %v1316 = vunpack.c.l.b16 %v797
    %v1317 = vunpack.c.l.b16 %v798
    %v1318 = vunpack.c.l.b16 %v799
    %v1319 = vunpack.c.l.b16 %v800
    %v1320 = vunpack.c.l.b16 %v801
    %v1321 = vunpack.c.l.b16 %v802
    %v1322 = vunpack.c.l.b16 %v803
    %v1323 = vunpack.c.l.b16 %v804
    %v1324 = vunpack.c.l.b16 %v805
    %v1325 = vunpack.c.l.b16 %v806
    %v1326 = vunpack.c.l.b16 %v807
    %v1327 = vunpack.c.l.b16 %v808
    %v1328 = vunpack.c.l.b16 %v809
    %v1329 = vunpack.c.l.b16 %v810
    %v1330 = vunpack.c.l.b16 %v811
    %v1331 = vunpack.c.l.b16 %v812
    %v1332 = vunpack.c.l.b16 %v813
    %v1333 = vunpack.c.l.b16 %v814
    %v1334 = vunpack.c.l.b16 %v815
    %v1335 = vunpack.c.l.b16 %v816
    %v1336 = vunpack.c.l.b16 %v817
    %v1337 = vunpack.c.l.b16 %v818
    %v1338 = vunpack.c.l.b16 %v819
    %v1339 = vunpack.c.l.b16 %v820
    %v1340 = vunpack.c.l.b16 %v821
    %v1341 = vunpack.c.l.b16 %v822
    %v1342 = vunpack.c.l.b16 %v823
    %v1343 = vunpack.c.l.b16 %v824
    %v1344 = vunpack.c.l.b16 %v825
    %v1345 = vunpack.c.l.b16 %v826
    %v1346 = vunpack.c.l.b16 %v827
    %v1347 = vunpack.c.l.b16 %v828
    %v1348 = vunpack.c.l.b16 %v829
    %v1349 = vunpack.c.l.b16 %v830
    %v1350 = vunpack.c.l.b16 %v831
    %v1351 = vunpack.c.l.b16 %v832
    %v1352 = vunpack.c.l.b16 %v833
    %v1353 = vunpack.c.l.b16 %v834
    %v1354 = vunpack.c.l.b16 %v835
    %v1355 = vunpack.c.l.b16 %v836
    %v1356 = vunpack.c.l.b16 %v837
    %v1357 = vunpack.c.l.b16 %v838
    %v1358 = vunpack.c.l.b16 %v839
    %v1359 = vunpack.c.l.b16 %v840
    %v1360 = vunpack.c.l.b16 %v841
    %v1361 = vunpack.c.l.b16 %v842
    %v1362 = vunpack.c.l.b16 %v843
    %v1363 = vunpack.c.l.b16 %v844
    %v1364 = vunpack.c.l.b16 %v845
    %v1365 = vunpack.c.l.b16 %v846
    %v1366 = vunpack.c.l.b16 %v847
    %v1367 = vunpack.c.l.b16 %v848
    %v1368 = vunpack.c.l.b16 %v849
    %v1369 = vunpack.c.l.b16 %v850
    %v1370 = vunpack.c.l.b16 %v851
    %v1371 = vunpack.c.l.b16 %v852
    %v1372 = vunpack.c.l.b16 %v853
    %v1373 = vunpack.c.l.b16 %v854
    %v1374 = vunpack.c.l.b16 %v855
    %v1375 = vunpack.c.l.b16 %v856
    %v1376 = vunpack.c.l.b16 %v857
    %v1377 = vunpack.c.l.b16 %v858
    %v1378 = vunpack.c.l.b16 %v859
    %v1379 = vunpack.c.l.b16 %v860
    %v1380 = vunpack.c.l.b16 %v861
    %v1381 = vunpack.c.l.b16 %v862
    %v1382 = vunpack.c.l.b16 %v863
    %v1383 = vunpack.c.l.b16 %v864
    %v1384 = vunpack.c.l.b16 %v865
    %v1385 = vunpack.c.l.b16 %v866
    %v1386 = vunpack.c.l.b16 %v867
    %v1387 = vunpack.c.l.b16 %v868
    %v1388 = vunpack.c.l.b16 %v869
    %v1389 = vunpack.c.l.b16 %v870
    %v1390 = vunpack.c.l.b16 %v871
    %v1391 = vunpack.c.l.b16 %v872
    %v1392 = vunpack.c.l.b16 %v873
    %v1393 = vunpack.c.l.b16 %v874
    %v1394 = vunpack.c.l.b16 %v875
    %v1395 = vunpack.c.l.b16 %v876
    %v1396 = vunpack.c.l.b16 %v877
    %v1397 = vunpack.c.l.b16 %v878
    %v1398 = vunpack.c.l.b16 %v879
    %v1399 = vunpack.c.l.b16 %v880
    %v1400 = vunpack.c.l.b16 %v881
    %v1401 = vunpack.c.l.b16 %v882
    %v1402 = vunpack.c.l.b16 %v883
    %v1403 = vunpack.c.l.b16 %v884
    %v1404 = vunpack.c.l.b16 %v885
    %v1405 = vunpack.c.l.b16 %v886
    %v1406 = vunpack.c.l.b16 %v887
    %v1407 = vunpack.c.l.b16 %v888
    %v1408 = vunpack.c.l.b16 %v889
    %v1409 = vunpack.c.l.b16 %v890
    %v1410 = vunpack.c.l.b16 %v891
    %v1411 = vunpack.c.l.b16 %v892
    %v1412 = vunpack.c.l.b16 %v893
    %v1413 = vunpack.c.l.b16 %v894
    %v1414 = vunpack.c.l.b16 %v895
    %v1415 = vunpack.c.l.b16 %v896
    %v1416 = vunpack.c.l.b16 %v897
    %v1417 = vunpack.c.l.b16 %v898
    %v1418 = vunpack.c.l.b16 %v899
    %v1419 = vunpack.c.l.b16 %v900
    %v1420 = vunpack.c.l.b16 %v901
    %v1421 = vunpack.c.l.b16 %v902
    %v1422 = vunpack.c.l.b16 %v903
    %v1423 = vunpack.c.l.b16 %v904
    %v1424 = vunpack.c.l.b16 %v905
    %v1425 = vunpack.c.l.b16 %v906
    %v1426 = vunpack.c.l.b16 %v907
    %v1427 = vunpack.c.l.b16 %v908
    %v1428 = vunpack.c.l.b16 %v909
    %v1429 = vunpack.c.l.b16 %v910
    %v1430 = vunpack.c.l.b16 %v911
    %v1431 = vunpack.c.l.b16 %v912
    %v1432 = vunpack.c.l.b16 %v913
    %v1433 = vunpack.c.l.b16 %v914
    %v1434 = vunpack.c.l.b16 %v915
    %v1435 = vunpack.c.l.b16 %v916
    %v1436 = vunpack.c.l.b16 %v917
    %v1437 = vunpack.c.l.b16 %v918
    %v1438 = vunpack.c.l.b16 %v919
    %v1439 = vunpack.c.l.b16 %v920
    %v1440 = vunpack.c.l.b16 %v921
    %v1441 = vunpack.c.l.b16 %v922
    %v1442 = vunpack.c.l.b16 %v923
    %v1443 = vunpack.c.l.b16 %v924
    %v1444 = vunpack.c.l.b16 %v925
    %v1445 = vunpack.c.l.b16 %v926
    %v1446 = vunpack.c.l.b16 %v927
    %v1447 = vunpack.c.l.b16 %v928
    %v1448 = vunpack.c.l.b16 %v929
    %v1449 = vunpack.c.l.b16 %v930
    %v1450 = vunpack.c.l.b16 %v931
    %v1451 = vunpack.c.l.b16 %v932
    %v1452 = vunpack.c.l.b16 %v933
    %v1453 = vunpack.c.l.b16 %v934
    %v1454 = vunpack.c.l.b16 %v935
    %v1455 = vunpack.c.l.b16 %v936
    %v1456 = vunpack.c.l.b16 %v937
    %v1457 = vunpack.c.l.b16 %v938
    %v1458 = vunpack.c.l.b16 %v939
    %v1459 = vunpack.c.l.b16 %v940
    %v1460 = vunpack.c.l.b16 %v941
    %v1461 = vunpack.c.l.b16 %v942
    %v1462 = vunpack.c.l.b16 %v943
    %v1463 = vunpack.c.l.b16 %v944
    %v1464 = vunpack.c.l.b16 %v945
    %v1465 = vunpack.c.l.b16 %v946
    %v1466 = vunpack.c.l.b16 %v947
    %v1467 = vunpack.c.l.b16 %v948
    %v1468 = vunpack.c.l.b16 %v949
    %v1469 = vunpack.c.l.b16 %v950
    %v1470 = vunpack.c.l.b16 %v951
    %v1471 = vunpack.c.l.b16 %v952
    %v1472 = vunpack.c.l.b16 %v953
    %v1473 = vunpack.c.l.b16 %v954
    %v1474 = vunpack.c.l.b16 %v955
    %v1475 = vpack.c.b16 %v1220, %v1219
    %v1476 = vpack.c.b16 %v1222, %v1221
    %v1477 = vpack.c.b16 %v1224, %v1223
    %v1478 = vpack.c.b16 %v1226, %v1225
    %v1479 = vpack.c.b16 %v1228, %v1227
    %v1480 = vpack.c.b16 %v1230, %v1229
    %v1481 = vpack.c.b16 %v1232, %v1231
    %v1482 = vpack.c.b16 %v1234, %v1233
    %v1483 = vpack.c.b16 %v1236, %v1235
    %v1484 = vpack.c.b16 %v1238, %v1237
    %v1485 = vpack.c.b16 %v1240, %v1239
    %v1486 = vpack.c.b16 %v1242, %v1241
    %v1487 = vpack.c.b16 %v1244, %v1243
    %v1488 = vpack.c.b16 %v1246, %v1245
    %v1489 = vpack.c.b16 %v1248, %v1247
    %v1490 = vpack.c.b16 %v1250, %v1249
    %v1491 = vpack.c.b16 %v1252, %v1251
    %v1492 = vpack.c.b16 %v1254, %v1253
    %v1493 = vpack.c.b16 %v1256, %v1255
    %v1494 = vpack.c.b16 %v1258, %v1257
    %v1495 = vpack.c.b16 %v1260, %v1259
    %v1496 = vpack.c.b16 %v1262, %v1261
    %v1497 = vpack.c.b16 %v1264, %v1263
    %v1498 = vpack.c.b16 %v1266, %v1265
    %v1499 = vpack.c.b16 %v1268, %v1267
    %v1500 = vpack.c.b16 %v1270, %v1269
    %v1501 = vpack.c.b16 %v1272, %v1271
    %v1502 = vpack.c.b16 %v1274, %v1273
    %v1503 = vpack.c.b16 %v1276, %v1275
    %v1504 = vpack.c.b16 %v1278, %v1277
    %v1505 = vpack.c.b16 %v1280, %v1279
    %v1506 = vpack.c.b16 %v1282, %v1281
    %v1507 = vpack.c.b16 %v1284, %v1283
    %v1508 = vpack.c.b16 %v1286, %v1285
    %v1509 = vpack.c.b16 %v1288, %v1287
    %v1510 = vpack.c.b16 %v1290, %v1289
    %v1511 = vpack.c.b16 %v1292, %v1291
    %v1512 = vpack.c.b16 %v1294, %v1293
    %v1513 = vpack.c.b16 %v1296, %v1295
    %v1514 = vpack.c.b16 %v1298, %v1297
    %v1515 = vpack.c.b16 %v1300, %v1299
    %v1516 = vpack.c.b16 %v1302, %v1301
    %v1517 = vpack.c.b16 %v1304, %v1303
    %v1518 = vpack.c.b16 %v1306, %v1305
    %v1519 = vpack.c.b16 %v1308, %v1307
    %v1520 = vpack.c.b16 %v1310, %v1309
    %v1521 = vpack.c.b16 %v1312, %v1311
    %v1522 = vpack.c.b16 %v1314, %v1313
    %v1523 = vpack.c.b16 %v1316, %v1315
    %v1524 = vpack.c.b16 %v1318, %v1317
    %v1525 = vpack.c.b16 %v1320, %v1319
    %v1526 = vpack.c.b16 %v1322, %v1321
    %v1527 = vpack.c.b16 %v1324, %v1323
    %v1528 = vpack.c.b16 %v1326, %v1325
    %v1529 = vpack.c.b16 %v1328, %v1327
    %v1530 = vpack.c.b16 %v1330, %v1329
    %v1531 = vpack.c.b16 %v1332, %v1331
    %v1532 = vpack.c.b16 %v1334, %v1333
    %v1533 = vpack.c.b16 %v1336, %v1335
    %v1534 = vpack.c.b16 %v1338, %v1337
    %v1535 = vpack.c.b16 %v1340, %v1339
    %v1536 = vpack.c.b16 %v1342, %v1341
    %v1537 = vpack.c.b16 %v1344, %v1343
    %v1538 = vpack.c.b16 %v1346, %v1345
    %v1539 = vpack.c.b16 %v1348, %v1347
    %v1540 = vpack.c.b16 %v1350, %v1349
    %v1541 = vpack.c.b16 %v1352, %v1351
    %v1542 = vpack.c.b16 %v1354, %v1353
    %v1543 = vpack.c.b16 %v1356, %v1355
    %v1544 = vpack.c.b16 %v1358, %v1357
    %v1545 = vpack.c.b16 %v1360, %v1359
    %v1546 = vpack.c.b16 %v1362, %v1361
    %v1547 = vpack.c.b16 %v1364, %v1363
    %v1548 = vpack.c.b16 %v1366, %v1365
    %v1549 = vpack.c.b16 %v1368, %v1367
    %v1550 = vpack.c.b16 %v1370, %v1369
    %v1551 = vpack.c.b16 %v1372, %v1371
    %v1552 = vpack.c.b16 %v1374, %v1373
    %v1553 = vpack.c.b16 %v1376, %v1375
    %v1554 = vpack.c.b16 %v1378, %v1377
    %v1555 = vpack.c.b16 %v1380, %v1379
    %v1556 = vpack.c.b16 %v1382, %v1381
    %v1557 = vpack.c.b16 %v1384, %v1383
    %v1558 = vpack.c.b16 %v1386, %v1385
    %v1559 = vpack.c.b16 %v1388, %v1387
    %v1560 = vpack.c.b16 %v1390, %v1389
    %v1561 = vpack.c.b16 %v1392, %v1391
    %v1562 = vpack.c.b16 %v1394, %v1393
    %v1563 = vpack.c.b16 %v1396, %v1395
    %v1564 = vpack.c.b16 %v1398, %v1397
    %v1565 = vpack.c.b16 %v1400, %v1399
    %v1566 = vpack.c.b16 %v1402, %v1401
    %v1567 = vpack.c.b16 %v1404, %v1403
    %v1568 = vpack.c.b16 %v1406, %v1405
    %v1569 = vpack.c.b16 %v1408, %v1407
    %v1570 = vpack.c.b16 %v1410, %v1409
    %v1571 = vpack.c.b16 %v1412, %v1411
    %v1572 = vpack.c.b16 %v1414, %v1413
    %v1573 = vpack.c.b16 %v1416, %v1415
    %v1574 = vpack.c.b16 %v1418, %v1417
    %v1575 = vpack.c.b16 %v1420, %v1419
    %v1576 = vpack.c.b16 %v1422, %v1421
    %v1577 = vpack.c.b16 %v1424, %v1423
    %v1578 = vpack.c.b16 %v1426, %v1425
    %v1579 = vpack.c.b16 %v1428, %v1427
    %v1580 = vpack.c.b16 %v1430, %v1429
    %v1581 = vpack.c.b16 %v1432, %v1431
    %v1582 = vpack.c.b16 %v1434, %v1433
    %v1583 = vpack.c.b16 %v1436, %v1435
    %v1584 = vpack.c.b16 %v1438, %v1437
    %v1585 = vpack.c.b16 %v1440, %v1439
    %v1586 = vpack.c.b16 %v1442, %v1441
    %v1587 = vpack.c.b16 %v1444, %v1443
    %v1588 = vpack.c.b16 %v1446, %v1445
    %v1589 = vpack.c.b16 %v1448, %v1447
    %v1590 = vpack.c.b16 %v1450, %v1449
    %v1591 = vpack.c.b16 %v1452, %v1451
    %v1592 = vpack.c.b16 %v1454, %v1453
    %v1593 = vpack.c.b16 %v1456, %v1455
    %v1594 = vpack.c.b16 %v1458, %v1457
    %v1595 = vpack.c.b16 %v1460, %v1459
    %v1596 = vpack.c.b16 %v1462, %v1461
    %v1597 = vpack.c.b16 %v1464, %v1463
    %v1598 = vpack.c.b16 %v1466, %v1465
    %v1599 = vpack.c.b16 %v1468, %v1467
    %v1600 = vpack.c.b16 %v1470, %v1469
    %v1601 = vpack.c.b16 %v1472, %v1471
    %v1602 = vpack.c.b16 %v1474, %v1473
    %1731 = vmatprep.subr.bf16.mxu0 0
    %1732 = vmatpush1.bf16.msra.mxu0 %v1482
    %1733 = vmatprep.subr.bf16.mxu0 0
    %1734 = vmatpush1.bf16.msra.mxu0 %v1481
    %1735 = vmatprep.subr.bf16.mxu0 0
    %1736 = vmatpush1.bf16.msra.mxu0 %v1480
    %1737 = vmatprep.subr.bf16.mxu0 0
    %1738 = vmatpush1.bf16.msra.mxu0 %v1479
    %1739 = vmatprep.subr.bf16.mxu0 0
    %1740 = vmatpush1.bf16.msra.mxu0 %v1478
    %1741 = vmatprep.subr.bf16.mxu0 0
    %1742 = vmatpush1.bf16.msra.mxu0 %v1477
    %1743 = vmatprep.subr.bf16.mxu0 0
    %1744 = vmatpush1.bf16.msra.mxu0 %v1476
    %1745 = vmatprep.subr.bf16.mxu0 0
    %1746 = vmatpush1.bf16.msra.mxu0 %v1475
    %1747 = vmatprep.subr.bf16.mxu0 0
    %1748 = vmatpush2.bf16.msra.mxu0 %v1490
    %1749 = vmatprep.subr.bf16.mxu0 0
    %1750 = vmatpush2.bf16.msra.mxu0 %v1489
    %1751 = vmatprep.subr.bf16.mxu0 0
    %1752 = vmatpush2.bf16.msra.mxu0 %v1488
    %1753 = vmatprep.subr.bf16.mxu0 0
    %1754 = vmatpush2.bf16.msra.mxu0 %v1487
    %1755 = vmatprep.subr.bf16.mxu0 0
    %1756 = vmatpush2.bf16.msra.mxu0 %v1486
    %1757 = vmatprep.subr.bf16.mxu0 0
    %1758 = vmatpush2.bf16.msra.mxu0 %v1485
    %1759 = vmatprep.subr.bf16.mxu0 0
    %1760 = vmatpush2.bf16.msra.mxu0 %v1484
    %1761 = vmatprep.subr.bf16.mxu0 0
    %1762 = vmatpush2.bf16.msra.mxu0 %v1483
    %1763 = vmatprep.mubr.bf16.mxu0 %v685
    %1764 = vmatmul.mubr.bf16.gmra.mxu0 %v684
    %v1765 = vpop.f32.mrf.mxu0
    %v1766 = vadd.f32 %v961, %v1765
    %v1767 = vpop.f32.mrf.mxu0
    %v1768 = vpop.f32.mrf.mxu0
    %v1769 = vpop.f32.mrf.mxu0
    %1770 = vdwg.mxu0
    %1771 = vmatprep.subr.bf16.mxu0 0
    %1772 = vmatpush1.bf16.msra.mxu0 %v1498
    %1773 = vmatprep.subr.bf16.mxu0 0
    %1774 = vmatpush1.bf16.msra.mxu0 %v1497
    %1775 = vmatprep.subr.bf16.mxu0 0
    %1776 = vmatpush1.bf16.msra.mxu0 %v1496
    %1777 = vmatprep.subr.bf16.mxu0 0
    %1778 = vmatpush1.bf16.msra.mxu0 %v1495
    %1779 = vmatprep.subr.bf16.mxu0 0
    %1780 = vmatpush1.bf16.msra.mxu0 %v1494
    %1781 = vmatprep.subr.bf16.mxu0 0
    %1782 = vmatpush1.bf16.msra.mxu0 %v1493
    %1783 = vmatprep.subr.bf16.mxu0 0
    %1784 = vmatpush1.bf16.msra.mxu0 %v1492
    %1785 = vmatprep.subr.bf16.mxu0 0
    %1786 = vmatpush1.bf16.msra.mxu0 %v1491
    %1787 = vmatprep.subr.bf16.mxu0 0
    %1788 = vmatpush2.bf16.msra.mxu0 %v1506
    %1789 = vmatprep.subr.bf16.mxu0 0
    %1790 = vmatpush2.bf16.msra.mxu0 %v1505
    %1791 = vmatprep.subr.bf16.mxu0 0
    %1792 = vmatpush2.bf16.msra.mxu0 %v1504
    %1793 = vmatprep.subr.bf16.mxu0 0
    %1794 = vmatpush2.bf16.msra.mxu0 %v1503
    %1795 = vmatprep.subr.bf16.mxu0 0
    %1796 = vmatpush2.bf16.msra.mxu0 %v1502
    %1797 = vmatprep.subr.bf16.mxu0 0
    %1798 = vmatpush2.bf16.msra.mxu0 %v1501
    %1799 = vmatprep.subr.bf16.mxu0 0
    %1800 = vmatpush2.bf16.msra.mxu0 %v1500
    %1801 = vmatprep.subr.bf16.mxu0 0
    %1802 = vmatpush2.bf16.msra.mxu0 %v1499
    %1803 = vmatprep.mubr.bf16.mxu0 %v687
    %1804 = vmatmul.mubr.bf16.gmra.mxu0 %v686
    %v1805 = vpop.f32.mrf.mxu0
    %v1806 = vadd.f32 %v1766, %v1805
    %v1807 = vpop.f32.mrf.mxu0
    %v1808 = vpop.f32.mrf.mxu0
    %v1809 = vpop.f32.mrf.mxu0
    %1810 = vdwg.mxu0
    %1811 = vmatprep.subr.bf16.mxu0 0
    %1812 = vmatpush1.bf16.msra.mxu0 %v1514
    %1813 = vmatprep.subr.bf16.mxu0 0
    %1814 = vmatpush1.bf16.msra.mxu0 %v1513
    %1815 = vmatprep.subr.bf16.mxu0 0
    %1816 = vmatpush1.bf16.msra.mxu0 %v1512
    %1817 = vmatprep.subr.bf16.mxu0 0
    %1818 = vmatpush1.bf16.msra.mxu0 %v1511
    %1819 = vmatprep.subr.bf16.mxu0 0
    %1820 = vmatpush1.bf16.msra.mxu0 %v1510
    %1821 = vmatprep.subr.bf16.mxu0 0
    %1822 = vmatpush1.bf16.msra.mxu0 %v1509
    %1823 = vmatprep.subr.bf16.mxu0 0
    %1824 = vmatpush1.bf16.msra.mxu0 %v1508
    %1825 = vmatprep.subr.bf16.mxu0 0
    %1826 = vmatpush1.bf16.msra.mxu0 %v1507
    %1827 = vmatprep.subr.bf16.mxu0 0
    %1828 = vmatpush2.bf16.msra.mxu0 %v1522
    %1829 = vmatprep.subr.bf16.mxu0 0
    %1830 = vmatpush2.bf16.msra.mxu0 %v1521
    %1831 = vmatprep.subr.bf16.mxu0 0
    %1832 = vmatpush2.bf16.msra.mxu0 %v1520
    %1833 = vmatprep.subr.bf16.mxu0 0
    %1834 = vmatpush2.bf16.msra.mxu0 %v1519
    %1835 = vmatprep.subr.bf16.mxu0 0
    %1836 = vmatpush2.bf16.msra.mxu0 %v1518
    %1837 = vmatprep.subr.bf16.mxu0 0
    %1838 = vmatpush2.bf16.msra.mxu0 %v1517
    %1839 = vmatprep.subr.bf16.mxu0 0
    %1840 = vmatpush2.bf16.msra.mxu0 %v1516
    %1841 = vmatprep.subr.bf16.mxu0 0
    %1842 = vmatpush2.bf16.msra.mxu0 %v1515
    %1843 = vmatprep.mubr.bf16.mxu0 %v689
    %1844 = vmatmul.mubr.bf16.gmra.mxu0 %v688
    %v1845 = vpop.f32.mrf.mxu0
    %v1846 = vadd.f32 %v1806, %v1845
    %v1847 = vpop.f32.mrf.mxu0
    %v1848 = vpop.f32.mrf.mxu0
    %v1849 = vpop.f32.mrf.mxu0
    %1850 = vdwg.mxu0
    %1851 = vmatprep.subr.bf16.mxu0 0
    %1852 = vmatpush1.bf16.msra.mxu0 %v1530
    %1853 = vmatprep.subr.bf16.mxu0 0
    %1854 = vmatpush1.bf16.msra.mxu0 %v1529
    %1855 = vmatprep.subr.bf16.mxu0 0
    %1856 = vmatpush1.bf16.msra.mxu0 %v1528
    %1857 = vmatprep.subr.bf16.mxu0 0
    %1858 = vmatpush1.bf16.msra.mxu0 %v1527
    %1859 = vmatprep.subr.bf16.mxu0 0
    %1860 = vmatpush1.bf16.msra.mxu0 %v1526
    %1861 = vmatprep.subr.bf16.mxu0 0
    %1862 = vmatpush1.bf16.msra.mxu0 %v1525
    %1863 = vmatprep.subr.bf16.mxu0 0
    %1864 = vmatpush1.bf16.msra.mxu0 %v1524
    %1865 = vmatprep.subr.bf16.mxu0 0
    %1866 = vmatpush1.bf16.msra.mxu0 %v1523
    %1867 = vmatprep.subr.bf16.mxu0 0
    %1868 = vmatpush2.bf16.msra.mxu0 %v1538
    %1869 = vmatprep.subr.bf16.mxu0 0
    %1870 = vmatpush2.bf16.msra.mxu0 %v1537
    %1871 = vmatprep.subr.bf16.mxu0 0
    %1872 = vmatpush2.bf16.msra.mxu0 %v1536
    %1873 = vmatprep.subr.bf16.mxu0 0
    %1874 = vmatpush2.bf16.msra.mxu0 %v1535
    %1875 = vmatprep.subr.bf16.mxu0 0
    %1876 = vmatpush2.bf16.msra.mxu0 %v1534
    %1877 = vmatprep.subr.bf16.mxu0 0
    %1878 = vmatpush2.bf16.msra.mxu0 %v1533
    %1879 = vmatprep.subr.bf16.mxu0 0
    %1880 = vmatpush2.bf16.msra.mxu0 %v1532
    %1881 = vmatprep.subr.bf16.mxu0 0
    %1882 = vmatpush2.bf16.msra.mxu0 %v1531
    %1883 = vmatprep.mubr.bf16.mxu0 %v691
    %1884 = vmatmul.mubr.bf16.gmra.mxu0 %v690
    %v1885 = vpop.f32.mrf.mxu0
    %v1886 = vadd.f32 %v1846, %v1885
    %v1887 = vpop.f32.mrf.mxu0
    %v1888 = vpop.f32.mrf.mxu0
    %v1889 = vpop.f32.mrf.mxu0
    %1890 = vdwg.mxu0
    %1891 = vmatprep.subr.bf16.mxu0 0
    %1892 = vmatpush1.bf16.msra.mxu0 %v1546
    %1893 = vmatprep.subr.bf16.mxu0 0
    %1894 = vmatpush1.bf16.msra.mxu0 %v1545
    %1895 = vmatprep.subr.bf16.mxu0 0
    %1896 = vmatpush1.bf16.msra.mxu0 %v1544
    %1897 = vmatprep.subr.bf16.mxu0 0
    %1898 = vmatpush1.bf16.msra.mxu0 %v1543
    %1899 = vmatprep.subr.bf16.mxu0 0
    %1900 = vmatpush1.bf16.msra.mxu0 %v1542
    %1901 = vmatprep.subr.bf16.mxu0 0
    %1902 = vmatpush1.bf16.msra.mxu0 %v1541
    %1903 = vmatprep.subr.bf16.mxu0 0
    %1904 = vmatpush1.bf16.msra.mxu0 %v1540
    %1905 = vmatprep.subr.bf16.mxu0 0
    %1906 = vmatpush1.bf16.msra.mxu0 %v1539
    %1907 = vmatprep.subr.bf16.mxu0 0
    %1908 = vmatpush2.bf16.msra.mxu0 %v1554
    %1909 = vmatprep.subr.bf16.mxu0 0
    %1910 = vmatpush2.bf16.msra.mxu0 %v1553
    %1911 = vmatprep.subr.bf16.mxu0 0
    %1912 = vmatpush2.bf16.msra.mxu0 %v1552
    %1913 = vmatprep.subr.bf16.mxu0 0
    %1914 = vmatpush2.bf16.msra.mxu0 %v1551
    %1915 = vmatprep.subr.bf16.mxu0 0
    %1916 = vmatpush2.bf16.msra.mxu0 %v1550
    %1917 = vmatprep.subr.bf16.mxu0 0
    %1918 = vmatpush2.bf16.msra.mxu0 %v1549
    %1919 = vmatprep.subr.bf16.mxu0 0
    %1920 = vmatpush2.bf16.msra.mxu0 %v1548
    %1921 = vmatprep.subr.bf16.mxu0 0
    %1922 = vmatpush2.bf16.msra.mxu0 %v1547
    %1923 = vmatprep.mubr.bf16.mxu0 %v693
    %1924 = vmatmul.mubr.bf16.gmra.mxu0 %v692
    %v1925 = vpop.f32.mrf.mxu0
    %v1926 = vadd.f32 %v1886, %v1925
    %v1927 = vpop.f32.mrf.mxu0
    %v1928 = vpop.f32.mrf.mxu0
    %v1929 = vpop.f32.mrf.mxu0
    %1930 = vdwg.mxu0
    %1931 = vmatprep.subr.bf16.mxu0 0
    %1932 = vmatpush1.bf16.msra.mxu0 %v1562
    %1933 = vmatprep.subr.bf16.mxu0 0
    %1934 = vmatpush1.bf16.msra.mxu0 %v1561
    %1935 = vmatprep.subr.bf16.mxu0 0
    %1936 = vmatpush1.bf16.msra.mxu0 %v1560
    %1937 = vmatprep.subr.bf16.mxu0 0
    %1938 = vmatpush1.bf16.msra.mxu0 %v1559
    %1939 = vmatprep.subr.bf16.mxu0 0
    %1940 = vmatpush1.bf16.msra.mxu0 %v1558
    %1941 = vmatprep.subr.bf16.mxu0 0
    %1942 = vmatpush1.bf16.msra.mxu0 %v1557
    %1943 = vmatprep.subr.bf16.mxu0 0
    %1944 = vmatpush1.bf16.msra.mxu0 %v1556
    %1945 = vmatprep.subr.bf16.mxu0 0
    %1946 = vmatpush1.bf16.msra.mxu0 %v1555
    %1947 = vmatprep.subr.bf16.mxu0 0
    %1948 = vmatpush2.bf16.msra.mxu0 %v1570
    %1949 = vmatprep.subr.bf16.mxu0 0
    %1950 = vmatpush2.bf16.msra.mxu0 %v1569
    %1951 = vmatprep.subr.bf16.mxu0 0
    %1952 = vmatpush2.bf16.msra.mxu0 %v1568
    %1953 = vmatprep.subr.bf16.mxu0 0
    %1954 = vmatpush2.bf16.msra.mxu0 %v1567
    %1955 = vmatprep.subr.bf16.mxu0 0
    %1956 = vmatpush2.bf16.msra.mxu0 %v1566
    %1957 = vmatprep.subr.bf16.mxu0 0
    %1958 = vmatpush2.bf16.msra.mxu0 %v1565
    %1959 = vmatprep.subr.bf16.mxu0 0
    %1960 = vmatpush2.bf16.msra.mxu0 %v1564
    %1961 = vmatprep.subr.bf16.mxu0 0
    %1962 = vmatpush2.bf16.msra.mxu0 %v1563
    %1963 = vmatprep.mubr.bf16.mxu0 %v695
    %1964 = vmatmul.mubr.bf16.gmra.mxu0 %v694
    %v1965 = vpop.f32.mrf.mxu0
    %v1966 = vadd.f32 %v1926, %v1965
    %v1967 = vpop.f32.mrf.mxu0
    %v1968 = vpop.f32.mrf.mxu0
    %v1969 = vpop.f32.mrf.mxu0
    %1970 = vdwg.mxu0
    %1971 = vmatprep.subr.bf16.mxu0 0
    %1972 = vmatpush1.bf16.msra.mxu0 %v1578
    %1973 = vmatprep.subr.bf16.mxu0 0
    %1974 = vmatpush1.bf16.msra.mxu0 %v1577
    %1975 = vmatprep.subr.bf16.mxu0 0
    %1976 = vmatpush1.bf16.msra.mxu0 %v1576
    %1977 = vmatprep.subr.bf16.mxu0 0
    %1978 = vmatpush1.bf16.msra.mxu0 %v1575
    %1979 = vmatprep.subr.bf16.mxu0 0
    %1980 = vmatpush1.bf16.msra.mxu0 %v1574
    %1981 = vmatprep.subr.bf16.mxu0 0
    %1982 = vmatpush1.bf16.msra.mxu0 %v1573
    %1983 = vmatprep.subr.bf16.mxu0 0
    %1984 = vmatpush1.bf16.msra.mxu0 %v1572
    %1985 = vmatprep.subr.bf16.mxu0 0
    %1986 = vmatpush1.bf16.msra.mxu0 %v1571
    %1987 = vmatprep.subr.bf16.mxu0 0
    %1988 = vmatpush2.bf16.msra.mxu0 %v1586
    %1989 = vmatprep.subr.bf16.mxu0 0
    %1990 = vmatpush2.bf16.msra.mxu0 %v1585
    %1991 = vmatprep.subr.bf16.mxu0 0
    %1992 = vmatpush2.bf16.msra.mxu0 %v1584
    %1993 = vmatprep.subr.bf16.mxu0 0
    %1994 = vmatpush2.bf16.msra.mxu0 %v1583
    %1995 = vmatprep.subr.bf16.mxu0 0
    %1996 = vmatpush2.bf16.msra.mxu0 %v1582
    %1997 = vmatprep.subr.bf16.mxu0 0
    %1998 = vmatpush2.bf16.msra.mxu0 %v1581
    %1999 = vmatprep.subr.bf16.mxu0 0
    %2000 = vmatpush2.bf16.msra.mxu0 %v1580
    %2001 = vmatprep.subr.bf16.mxu0 0
    %2002 = vmatpush2.bf16.msra.mxu0 %v1579
    %2003 = vmatprep.mubr.bf16.mxu0 %v697
    %2004 = vmatmul.mubr.bf16.gmra.mxu0 %v696
    %v2005 = vpop.f32.mrf.mxu0
    %v2006 = vadd.f32 %v1966, %v2005
    %v2007 = vpop.f32.mrf.mxu0
    %v2008 = vpop.f32.mrf.mxu0
    %v2009 = vpop.f32.mrf.mxu0
    %2010 = vdwg.mxu0
    %2011 = vmatprep.subr.bf16.mxu0 0
    %2012 = vmatpush1.bf16.msra.mxu0 %v1594
    %2013 = vmatprep.subr.bf16.mxu0 0
    %2014 = vmatpush1.bf16.msra.mxu0 %v1593
    %2015 = vmatprep.subr.bf16.mxu0 0
    %2016 = vmatpush1.bf16.msra.mxu0 %v1592
    %2017 = vmatprep.subr.bf16.mxu0 0
    %2018 = vmatpush1.bf16.msra.mxu0 %v1591
    %2019 = vmatprep.subr.bf16.mxu0 0
    %2020 = vmatpush1.bf16.msra.mxu0 %v1590
    %2021 = vmatprep.subr.bf16.mxu0 0
    %2022 = vmatpush1.bf16.msra.mxu0 %v1589
    %2023 = vmatprep.subr.bf16.mxu0 0
    %2024 = vmatpush1.bf16.msra.mxu0 %v1588
    %2025 = vmatprep.subr.bf16.mxu0 0
    %2026 = vmatpush1.bf16.msra.mxu0 %v1587
    %2027 = vmatprep.subr.bf16.mxu0 0
    %2028 = vmatpush2.bf16.msra.mxu0 %v1602
    %2029 = vmatprep.subr.bf16.mxu0 0
    %2030 = vmatpush2.bf16.msra.mxu0 %v1601
    %2031 = vmatprep.subr.bf16.mxu0 0
    %2032 = vmatpush2.bf16.msra.mxu0 %v1600
    %2033 = vmatprep.subr.bf16.mxu0 0
    %2034 = vmatpush2.bf16.msra.mxu0 %v1599
    %2035 = vmatprep.subr.bf16.mxu0 0
    %2036 = vmatpush2.bf16.msra.mxu0 %v1598
    %2037 = vmatprep.subr.bf16.mxu0 0
    %2038 = vmatpush2.bf16.msra.mxu0 %v1597
    %2039 = vmatprep.subr.bf16.mxu0 0
    %2040 = vmatpush2.bf16.msra.mxu0 %v1596
    %2041 = vmatprep.subr.bf16.mxu0 0
    %2042 = vmatpush2.bf16.msra.mxu0 %v1595
    %2043 = vmatprep.mubr.bf16.mxu0 %v699
    %2044 = vmatmul.mubr.bf16.gmra.mxu0 %v698
    %v2045 = vpop.f32.mrf.mxu0
    %v2046 = vadd.f32 %v2006, %v2045
    %v2047 = vpop.f32.mrf.mxu0
    %v2048 = vpop.f32.mrf.mxu0
    %v2049 = vpop.f32.mrf.mxu0
    %2050 = vdwg.mxu0
    %v2051 = vmax.f32 %v2046, 0.0
    %v2052 = vld [vmem:[%s3] sm:$0x1]
    %v2054 = vlaneseq
    %v2055 = vshrl.u32 %v2054, 7
    %v2056 = vsub.s32 0, %v2055
    %v2057 = vrot.slane %v2052, %v2056
    %v2059 = vmul.f32 %v2051, %v2057
    %vm2060 = vcmask 1041408
    %v2061 = vsel %vm2060, %v2059, 0.0
    %2062 = vadd.xlane.f32.xlu0 %v2061
    %v2063 = vpop.xlane.xlu0 %2062
    %s2064 = sld [smem:[#allocation3]]
    %v2065 = vstv %s2064
    %v2066 = vadd.f32 %v2063, %v2065
    %vm2067 = vcmask 1024
    %2068 = vst.msk [vmem:[%s5] sm:$0x3] %vm2067, %v2066
    // Predicated region
    $region30: #{tpu_custom_call.1} parent=1 // pred_check
      _
    $region31: #{tpu_custom_call.1} parent=1 // pred_check_branch
      %2070 = sbr.rel (0) target = $region33
    $region32: #{tpu_custom_call.1} parent=1 // pred_region
      _
    $region33: #{tpu_custom_call.1} parent=1 // pred_fallthru
      _
    // Predicated region
    $region34: #{tpu_custom_call.1} parent=1 // pred_check
      _
    $region35: #{tpu_custom_call.1} parent=1 // pred_check_branch
      %2072 = sbr.rel (0) target = $region37
    $region36: #{tpu_custom_call.1} parent=1 // pred_region
      _
    $region37: #{tpu_custom_call.1} parent=1 // pred_fallthru
      _
    %2073 = vsyncpa [#allocation5], 1
    %2074 = vsyncpa [#allocation7], 1

</llo_original>
